<compile_context>
chip_gen: v7x
topology: tpu7x:2x2x1
jax: 0.10.0
libtpu: 0.0.40
codegen_flags: <defaults>
</compile_context>

<pallas_src>
import functools

import jax
import jax.numpy as jnp
from jax.experimental import pallas as pl
from jax.experimental.pallas import tpu as pltpu


def _round_up(x, m):
    return ((x + m - 1) // m) * m


def _row_chunk(tile):
    # Epilogue row-chunk: keep per-chunk intermediates at <= (256, tile).
    if tile <= 256:
        return tile
    if tile % 256 == 0:
        return 256
    return 128


def _vmem_estimate(tile, L, itemsize, row_chunk):
    token_blocks = 2 * 2 * tile * L * itemsize      # 2 operands x double-buffer
    label_blocks = 2 * 2 * 2 * tile * 4             # row + col labels, 2 buffers
    out_block = 8 * 128 * 4
    epilogue = 6 * row_chunk * tile * 4             # sim / label / loss temps
    return token_blocks + label_blocks + out_block + epilogue + (2 << 20)


def _vmem_budget_bytes():
    try:
        phys = int(pltpu.get_tpu_info().vmem_capacity_bytes)
    except Exception:
        phys = 64 << 20   # conservative: smallest generation (v7x, 64 MiB/TC)
    return min(int(phys * 0.7), 96 << 20)


def _pick_tiling(N, L, itemsize, tile_req, budget):
    # Tile must be a multiple of 128 (lane constraint on the (1, tile) label
    # block and the lane-group reduction in the kernel).
    tile = max(128, (int(tile_req) // 128) * 128)
    tile = min(tile, _round_up(N, 128))
    while tile > 128 and _vmem_estimate(tile, L, itemsize, _row_chunk(tile)) > budget:
        tile -= 128
    return tile, _row_chunk(tile)


def _btc_loss_kernel(bi_ref, bj_ref, tok_i_ref, tok_j_ref,
                     lab_i_ref, lab_j_ref, out_ref,
                     *, alpha, tile, row_chunk):
    s = pl.program_id(0)

    # Single resident (8, 128) accumulator across the whole (arbitrary) grid.
    @pl.when(s == 0)
    def _():
        out_ref[...] = jnp.zeros_like(out_ref)

    b = tok_j_ref[...]            # (tile, L) column-block tokens (pre-normalized)
    lab_j = lab_j_ref[...]        # (1, tile) int32

    acc = jnp.zeros((8, 128), dtype=jnp.float32)
    # Process the epilogue in row chunks to bound vreg / scratch pressure when
    # the resident row block is large.
    for c in range(tile // row_chunk):          # static unroll (<= 4 chunks)
        r0 = c * row_chunk
        a = tok_i_ref[r0:r0 + row_chunk, :]      # (row_chunk, L)
        lab_i = lab_i_ref[r0:r0 + row_chunk, :]  # (row_chunk, 1) int32

        # Cosine-similarity tile straight off the MXU (norms pre-folded in the
        # wrapper); contract the last dim of BOTH operands -> no RHS transpose.
        sim = jax.lax.dot_general(
            a, b,
            dimension_numbers=(((1,), (1,)), ((), ())),
            preferred_element_type=jnp.float32)  # (row_chunk, tile) f32

        label_matrix = lab_i + lab_j             # (row_chunk, tile) int32, exact
        loss = jnp.where(label_matrix != 1,
                         1.0 - sim,
                         jnp.maximum(sim - alpha, 0.0))

        # Vreg-tiled partial sum: (row_chunk, tile) -> (8, 128), VALU adds only.
        part = loss.reshape(row_chunk // 8, 8, tile // 128, 128)
        acc = acc + part.sum(axis=0).sum(axis=1)

    # Off-diagonal block pairs stand in for two symmetric tiles -> weight 2.
    w = jnp.where(bi_ref[s] == bj_ref[s], 1.0, 2.0).astype(jnp.float32)
    out_ref[...] += w * acc


def binary_token_contrast_loss(tokens, labels, alpha=0.3, *,
                               tile=512, matmul_dtype=None):
    """Pallas implementation of BinaryTokenContrastLoss.forward.

    Args:
      tokens: (N, L) float array.
      labels: (N,) integer (binary) labels.
      alpha:  margin hyperparameter (static Python float).
      tile:   max square tile size for the N x N loss matrix.
      matmul_dtype: optional dtype for the MXU matmul (e.g. jnp.bfloat16 for
        full-rate MXU); None keeps the input token dtype.  Accumulation is
        always f32.

    Returns:
      scalar float32 loss (mean over the full N x N loss matrix).
    """
    assert tokens.ndim == 2
    assert tokens.shape[0] == labels.shape[0]
    N, L = tokens.shape

    # Hoisted L2 normalization, folded straight into the tokens (f32): the
    # in-kernel Gram tile is then directly the cosine-similarity tile.
    # (Like the PyTorch module, a zero-norm row yields NaN — no eps clamp.)
    t_f32 = tokens.astype(jnp.float32)
    inv_norm = jax.lax.rsqrt(jnp.sum(t_f32 * t_f32, axis=-1, keepdims=True))
    t_scaled = t_f32 * inv_norm
    mm_dtype = jnp.dtype(matmul_dtype) if matmul_dtype is not None else jnp.dtype(tokens.dtype)
    t_scaled = t_scaled.astype(mm_dtype)

    lab = labels.astype(jnp.int32)

    budget = _vmem_budget_bytes()
    tile, row_chunk = _pick_tiling(N, L, mm_dtype.itemsize, tile, budget)

    n_pad = _round_up(N, tile)
    pad = n_pad - N

    t_pad = jnp.pad(t_scaled, ((0, pad), (0, 0)))   # padded rows are zero vectors
    lab_pad = jnp.pad(lab, (0, pad))                # padded labels are 0
    lab_col = lab_pad.reshape(n_pad, 1)
    lab_row = lab_pad.reshape(1, n_pad)

    # Upper-triangular block pairs (bi <= bj), bi non-decreasing.
    n_blocks = n_pad // tile
    bi_list, bj_list = [], []
    for i in range(n_blocks):
        for j in range(i, n_blocks):
            bi_list.append(i)
            bj_list.append(j)
    bi_arr = jnp.asarray(bi_list, dtype=jnp.int32)
    bj_arr = jnp.asarray(bj_list, dtype=jnp.int32)
    n_steps = len(bi_list)

    est = _vmem_estimate(tile, L, mm_dtype.itemsize, row_chunk)
    vmem_limit = int(min(max(est + (4 << 20), 32 << 20), max(budget, 32 << 20)))
    if est + (2 << 20) > vmem_limit:
        # Very large L at the minimum tile: best effort (fits on 128-MiB parts).
        # TODO(synk): add an inner contraction (L) tiling axis for very large L.
        vmem_limit = int(est + (4 << 20))

    kernel = functools.partial(
        _btc_loss_kernel, alpha=float(alpha), tile=tile, row_chunk=row_chunk)

    acc = pl.pallas_call(
        kernel,
        out_shape=jax.ShapeDtypeStruct((8, 128), jnp.float32),
        grid_spec=pltpu.PrefetchScalarGridSpec(
            num_scalar_prefetch=2,
            grid=(n_steps,),
            in_specs=[
                pl.BlockSpec((tile, L), lambda s, bi, bj: (bi[s], 0)),   # row tokens
                pl.BlockSpec((tile, L), lambda s, bi, bj: (bj[s], 0)),   # col tokens
                pl.BlockSpec((tile, 1), lambda s, bi, bj: (bi[s], 0)),   # row labels
                pl.BlockSpec((1, tile), lambda s, bi, bj: (0, bj[s])),   # col labels
            ],
            out_specs=pl.BlockSpec((8, 128), lambda s, bi, bj: (0, 0)),
        ),
        compiler_params=pltpu.CompilerParams(
            dimension_semantics=("arbitrary",),
            vmem_limit_bytes=vmem_limit,
        ),
    )(bi_arr, bj_arr, t_pad, t_pad, lab_col, lab_row)

    total = jnp.sum(acc)

    if pad > 0:
        # Analytic padding contribution (no in-kernel mask): padded rows are
        # zero vectors (sim = 0) with label 0, so pad-pad pairs add 1 each and
        # pad-valid pairs add 1 if the valid label != 1, else max(-alpha, 0)
        # (counted for both orientations).
        num_ne1 = jnp.sum(lab != 1).astype(jnp.float32)
        num_eq1 = jnp.float32(N) - num_ne1
        neg_part = max(-float(alpha), 0.0)
        pad_f = jnp.float32(pad)
        total = total - (pad_f * pad_f
                         + 2.0 * pad_f * (num_ne1 + num_eq1 * neg_part))

    return total / jnp.float32(N * N)


def _reference_loss(tokens, labels, alpha=0.3):
    """Pure-JAX reference mirroring the PyTorch forward."""
    t = tokens.astype(jnp.float32)
    tn_ = t / jnp.linalg.norm(t, axis=-1, keepdims=True)
    sim = tn_ @ tn_.T
    lab = labels.astype(jnp.float32)
    label_matrix = lab[:, None] + lab[None, :]
    loss = jnp.where(label_matrix != 1.0, 1.0 - sim,
                     jnp.maximum(sim - alpha, 0.0))
    return jnp.mean(loss)


if __name__ == "__main__":
    key = jax.random.PRNGKey(0)
    k_tok, k_lab, k_tok2, k_lab2 = jax.random.split(key, 4)

    # Small shapes consistent with the module: tokens (N, L), binary labels (N,).
    N, L = 8, 32
    tokens = jax.random.normal(k_tok, (N, L), dtype=jnp.float32)
    labels = jax.random.randint(k_lab, (N,), 0, 2, dtype=jnp.int32)

    ref = jax.block_until_ready(_reference_loss(tokens, labels, alpha=0.3))

    # f32 matmul path (matches the reference to a few ulps).
    loss = jax.block_until_ready(
        binary_token_contrast_loss(tokens, labels, alpha=0.3))
    assert jnp.allclose(loss, ref, atol=1e-5, rtol=1e-5), (loss, ref)

    # bf16 fast path (full-rate MXU, f32 accumulation) — looser tolerance.
    loss_bf16 = jax.block_until_ready(
        binary_token_contrast_loss(tokens, labels, alpha=0.3,
                                   matmul_dtype=jnp.bfloat16))
    assert jnp.allclose(loss_bf16, ref, atol=2e-2, rtol=2e-2), (loss_bf16, ref)

    # Multi-block path: exercises the symmetric (triangular) tiling, the 2x
    # off-diagonal weighting and the analytic padding correction.
    N2, L2 = 200, 48
    tokens2 = jax.random.normal(k_tok2, (N2, L2), dtype=jnp.float32)
    labels2 = jax.random.randint(k_lab2, (N2,), 0, 2, dtype=jnp.int32)
    ref2 = jax.block_until_ready(_reference_loss(tokens2, labels2, alpha=0.3))
    loss2 = jax.block_until_ready(
        binary_token_contrast_loss(tokens2, labels2, alpha=0.3, tile=128))
    assert jnp.allclose(loss2, ref2, atol=5e-5, rtol=5e-5), (loss2, ref2)

    print("KERNEL_OK")
</pallas_src>

<mosaic_0001>
module attributes {stable_mosaic.version = 11 : i64} {
  func.func @_btc_loss_kernel(%arg0: i32, %arg1: memref<1xi32, #tpu.memory_space<smem>>, %arg2: memref<1xi32, #tpu.memory_space<smem>>, %arg3: memref<128x32xf32, #tpu.memory_space<vmem>>, %arg4: memref<128x32xf32, #tpu.memory_space<vmem>>, %arg5: memref<128x1xi32, #tpu.memory_space<vmem>>, %arg6: memref<1x128xi32, #tpu.memory_space<vmem>>, %arg7: memref<8x128xf32, #tpu.memory_space<vmem>>) attributes {dimension_semantics = [#tpu.dimension_semantics<arbitrary>], iteration_bounds = array<i64: 1>, scalar_prefetch = 2 : i64, scratch_operands = 0 : i64, tpu.core_type = #tpu.core_type<tc>, window_params = [{transform_indices = @transform_0, window_bounds = array<i64: 128, 32>}, {transform_indices = @transform_1, window_bounds = array<i64: 128, 32>}, {transform_indices = @transform_2, window_bounds = array<i64: 128, 1>}, {transform_indices = @transform_3, window_bounds = array<i64: 1, 128>}, {pipeline_mode = #tpu.pipeline_mode<synchronous>, transform_indices = @transform_4, window_bounds = array<i64: 8, 128>}]} {
    %c0_i32 = arith.constant 0 : i32
    %0 = arith.cmpi eq, %arg0, %c0_i32 : i32
    %1 = arith.extui %0 : i1 to i32
    %c0_i32_0 = arith.constant 0 : i32
    %2 = arith.cmpi ne, %1, %c0_i32_0 : i32
    scf.if %2 {
      %cst_20 = arith.constant 0.000000e+00 : f32
      %36 = vector.broadcast %cst_20 : f32 to vector<8x128xf32>
      %c0_21 = arith.constant 0 : index
      %c0_22 = arith.constant 0 : index
      %37 = vector.load %arg7[%c0_21, %c0_22] : memref<8x128xf32, #tpu.memory_space<vmem>>, vector<8x128xf32>
      tpu.vector_store %arg7[%c0_21, %c0_22], %36 {strides = array<i32>} : memref<8x128xf32, #tpu.memory_space<vmem>>, vector<8x128xf32>,
    } else {
    }
    %c0 = arith.constant 0 : index
    %c0_1 = arith.constant 0 : index
    %3 = vector.load %arg4[%c0, %c0_1] : memref<128x32xf32, #tpu.memory_space<vmem>>, vector<128x32xf32>
    %c0_2 = arith.constant 0 : index
    %c0_3 = arith.constant 0 : index
    %4 = vector.load %arg6[%c0_2, %c0_3] : memref<1x128xi32, #tpu.memory_space<vmem>>, vector<1x128xi32>
    %cst = arith.constant 0.000000e+00 : f32
    %5 = vector.broadcast %cst : f32 to vector<8x128xf32>
    %c0_4 = arith.constant 0 : index
    %c0_5 = arith.constant 0 : index
    %6 = vector.load %arg3[%c0_4, %c0_5] : memref<128x32xf32, #tpu.memory_space<vmem>>, vector<128x32xf32>
    %c0_6 = arith.constant 0 : index
    %c0_7 = arith.constant 0 : index
    %7 = vector.load %arg5[%c0_6, %c0_7] : memref<128x1xi32, #tpu.memory_space<vmem>>, vector<128x1xi32>
    %cst_8 = arith.constant dense<0.000000e+00> : vector<128x128xf32>
    %8 = tpu.matmul %6, %3, %cst_8 {dimension_numbers = #tpu.dot_dimension_numbers<[1], [1], [0], [0], [0, 0, 1, 0], [], []>} : vector<128x32xf32>, vector<128x32xf32>, vector<128x128xf32> -> vector<128x128xf32>
    %9 = vector.broadcast %7 : vector<128x1xi32> to vector<128x128xi32>
    %10 = vector.broadcast %4 : vector<1x128xi32> to vector<128x128xi32>
    %11 = arith.addi %9, %10 : vector<128x128xi32>
    %c1_i32 = arith.constant 1 : i32
    %12 = vector.broadcast %c1_i32 : i32 to vector<128x128xi32>
    %13 = arith.cmpi ne, %11, %12 : vector<128x128xi32>
    %cst_9 = arith.constant 1.000000e+00 : f32
    %14 = vector.broadcast %cst_9 : f32 to vector<128x128xf32>
    %15 = arith.subf %14, %8 : vector<128x128xf32>
    %cst_10 = arith.constant 3.000000e-01 : f32
    %16 = vector.broadcast %cst_10 : f32 to vector<128x128xf32>
    %17 = arith.subf %8, %16 : vector<128x128xf32>
    %cst_11 = arith.constant 0.000000e+00 : f32
    %18 = vector.broadcast %cst_11 : f32 to vector<128x128xf32>
    %19 = arith.maximumf %17, %18 : vector<128x128xf32>
    %20 = arith.select %13, %15, %19 : vector<128x128xi1>, vector<128x128xf32>
    %21 = vector.shape_cast %20 : vector<128x128xf32> to vector<16x8x1x128xf32>
    %cst_12 = arith.constant dense<0.000000e+00> : vector<8x1x128xf32>
    %22 = vector.multi_reduction <add>, %21, %cst_12 [0] : vector<16x8x1x128xf32> to vector<8x1x128xf32>
    %cst_13 = arith.constant dense<0.000000e+00> : vector<8x128xf32>
    %23 = vector.multi_reduction <add>, %22, %cst_13 [1] : vector<8x1x128xf32> to vector<8x128xf32>
    %24 = arith.addf %5, %23 : vector<8x128xf32>
    %25 = arith.index_cast %arg0 : i32 to index
    %26 = memref.load %arg1[%25] : memref<1xi32, #tpu.memory_space<smem>>
    %27 = arith.index_cast %arg0 : i32 to index
    %28 = memref.load %arg2[%27] : memref<1xi32, #tpu.memory_space<smem>>
    %29 = arith.cmpi eq, %26, %28 : i32
    %cst_14 = arith.constant 1.000000e+00 : f32
    %cst_15 = arith.constant 2.000000e+00 : f32
    %30 = arith.select %29, %cst_14, %cst_15 : f32
    %c0_16 = arith.constant 0 : index
    %c0_17 = arith.constant 0 : index
    %31 = vector.load %arg7[%c0_16, %c0_17] : memref<8x128xf32, #tpu.memory_space<vmem>>, vector<8x128xf32>
    %32 = vector.broadcast %30 : f32 to vector<8x128xf32>
    %33 = arith.mulf %32, %24 : vector<8x128xf32>
    %34 = arith.addf %31, %33 : vector<8x128xf32>
    %c0_18 = arith.constant 0 : index
    %c0_19 = arith.constant 0 : index
    %35 = vector.load %arg7[%c0_18, %c0_19] : memref<8x128xf32, #tpu.memory_space<vmem>>, vector<8x128xf32>
    tpu.vector_store %arg7[%c0_18, %c0_19], %34 {strides = array<i32>} : memref<8x128xf32, #tpu.memory_space<vmem>>, vector<8x128xf32>,
    return
  }
  func.func @transform_0(%arg0: i32, %arg1: memref<1xi32, #tpu.memory_space<smem>>, %arg2: memref<1xi32, #tpu.memory_space<smem>>) -> (i32, i32) {
    %0 = arith.index_cast %arg0 : i32 to index
    %1 = memref.load %arg1[%0] : memref<1xi32, #tpu.memory_space<smem>>
    %c0_i32 = arith.constant 0 : i32
    %c0_i32_0 = arith.constant 0 : i32
    return %1, %c0_i32 : i32, i32
  }
  func.func @transform_1(%arg0: i32, %arg1: memref<1xi32, #tpu.memory_space<smem>>, %arg2: memref<1xi32, #tpu.memory_space<smem>>) -> (i32, i32) {
    %0 = arith.index_cast %arg0 : i32 to index
    %1 = memref.load %arg2[%0] : memref<1xi32, #tpu.memory_space<smem>>
    %c0_i32 = arith.constant 0 : i32
    %c0_i32_0 = arith.constant 0 : i32
    return %1, %c0_i32 : i32, i32
  }
  func.func @transform_2(%arg0: i32, %arg1: memref<1xi32, #tpu.memory_space<smem>>, %arg2: memref<1xi32, #tpu.memory_space<smem>>) -> (i32, i32) {
    %0 = arith.index_cast %arg0 : i32 to index
    %1 = memref.load %arg1[%0] : memref<1xi32, #tpu.memory_space<smem>>
    %c0_i32 = arith.constant 0 : i32
    %c0_i32_0 = arith.constant 0 : i32
    return %1, %c0_i32 : i32, i32
  }
  func.func @transform_3(%arg0: i32, %arg1: memref<1xi32, #tpu.memory_space<smem>>, %arg2: memref<1xi32, #tpu.memory_space<smem>>) -> (i32, i32) {
    %0 = arith.index_cast %arg0 : i32 to index
    %1 = memref.load %arg2[%0] : memref<1xi32, #tpu.memory_space<smem>>
    %c0_i32 = arith.constant 0 : i32
    %c0_i32_0 = arith.constant 0 : i32
    return %c0_i32, %1 : i32, i32
  }
  func.func @transform_4(%arg0: i32, %arg1: memref<1xi32, #tpu.memory_space<smem>>, %arg2: memref<1xi32, #tpu.memory_space<smem>>) -> (i32, i32) {
    %c0_i32 = arith.constant 0 : i32
    %c0_i32_0 = arith.constant 0 : i32
    %c0_i32_1 = arith.constant 0 : i32
    return %c0_i32, %c0_i32_0 : i32, i32
  }
}

</mosaic_0001>

<llo_original>
// kernel: tpu_custom_call.1
$region0: #{tpu_custom_call.1}
  #allocation0 [shape = 'u32[]', space=smem, size = 0x4, offset = 0x4, fixed_abs, tag = 'smem constant byte address 0x4 - core index']
  #allocation1 [shape = 'u32[144,128]{1,0:T(1,128)}', space=vmem, size = 0x12000, scoped, tag = 'internal scratch']
  #allocation2 [shape = 's32[1]{0}', space=sflag, size = 0x4, scoped, tag = 'scoped memory for tpu_custom_call.1']
  #allocation3 [shape = 's32[1]{0:T(128)S(6)}', space=smem, size = 0x200, scoped, tag = 'prefetched SMEM operand 0']
  #allocation4 [shape = 's32[1]{0:T(128)S(6)}', space=smem, size = 0x200, scoped, tag = 'prefetched SMEM operand 1']
  %s0 = inlined_call_operand.<no memory space> [shape: s32[1], index: 0, kind: input, shape index: {}]
  %s1 = inlined_call_operand.<no memory space> [shape: s32[1], index: 1, kind: input, shape index: {}]
  %s2 = inlined_call_operand.vmem [shape: f32[128,32], index: 2, kind: input, shape index: {}]
  %s3 = inlined_call_operand.vmem [shape: f32[128,32], index: 3, kind: input, shape index: {}]
  %s4 = inlined_call_operand.vmem [shape: s32[128,1], index: 4, kind: input, shape index: {}]
  %s5 = inlined_call_operand.vmem [shape: s32[1,128], index: 5, kind: input, shape index: {}]
  %s6 = inlined_call_operand.hbm [shape: f32[8,128], index: 6, kind: output, shape index: {}]
  %s7 = sld [smem:[#allocation0]]
  $region30: #{tpu_custom_call.1} parent=0
    _
  %s9 = ssub.s32 1, %s7
  %s10 = scalar_select 0, %s9, %s7
  %11 = sst [smem:[#allocation3]] %s0
  %12 = sst [smem:[#allocation4]] %s1
  $region1: #{tpu_custom_call.1} parent=0
    #allocation5 [shape = 'u8[4096]{0}', space=vmem, size = 0x1000, scoped, tag = 'output window, operand 0, single buffered']
    #allocation6 [shape = 's32[1]{0}', space=sflag, size = 0x4, scoped, tag = 'scoped memory for tpu_custom_call.1']
    %13 = vsyncpa [#allocation6], 0
    // Predicated region
    $region2: #{tpu_custom_call.1} parent=1 // pred_check
      _
    $region3: #{tpu_custom_call.1} parent=1 // pred_check_branch
      %15 = sbr.rel (0) target = $region5
    $region4: #{tpu_custom_call.1} parent=1 // pred_region
      %s16 = sld [smem:[#allocation3]]
      %s17 = smul.u32 16, %s16
      %p18 = scmp.lt.s32.totalorder %s17, 15
      %s19 = scalar_select %p18, %s17, 15
      %s20 = smul.addr %s19, 8
      %s21 = scalar_lea.vmem %s2, %s20
      %s22 = sld [smem:[#allocation3]]
      %s23 = smul.u32 16, %s22
    $region5: #{tpu_custom_call.1} parent=1 // pred_fallthru
      _
    // Predicated region
    $region6: #{tpu_custom_call.1} parent=1 // pred_check
      _
    $region7: #{tpu_custom_call.1} parent=1 // pred_check_branch
      %25 = sbr.rel (0) target = $region9
    $region8: #{tpu_custom_call.1} parent=1 // pred_region
      %s26 = sld [smem:[#allocation4]]
      %s27 = smul.u32 16, %s26
      %p28 = scmp.lt.s32.totalorder %s27, 15
      %s29 = scalar_select %p28, %s27, 15
      %s30 = smul.addr %s29, 8
      %s31 = scalar_lea.vmem %s3, %s30
      %s32 = sld [smem:[#allocation4]]
      %s33 = smul.u32 16, %s32
    $region9: #{tpu_custom_call.1} parent=1 // pred_fallthru
      _
    // Predicated region
    $region10: #{tpu_custom_call.1} parent=1 // pred_check
      _
    $region11: #{tpu_custom_call.1} parent=1 // pred_check_branch
      %35 = sbr.rel (0) target = $region13
    $region12: #{tpu_custom_call.1} parent=1 // pred_region
      %s36 = sld [smem:[#allocation3]]
      %s37 = smul.u32 16, %s36
      %p38 = scmp.lt.s32.totalorder %s37, 15
      %s39 = scalar_select %p38, %s37, 15
      %s40 = smul.addr %s39, 8
      %s41 = scalar_lea.vmem %s4, %s40
      %s42 = sld [smem:[#allocation3]]
      %s43 = smul.u32 16, %s42
    $region13: #{tpu_custom_call.1} parent=1 // pred_fallthru
      _
    // Predicated region
    $region14: #{tpu_custom_call.1} parent=1 // pred_check
      _
    $region15: #{tpu_custom_call.1} parent=1 // pred_check_branch
      %45 = sbr.rel (0) target = $region17
    $region16: #{tpu_custom_call.1} parent=1 // pred_region
      %s46 = sld [smem:[#allocation4]]
      %p47 = scmp.lt.s32.totalorder %s46, 0
      %s48 = scalar_select %p47, %s46, 0
      %s49 = scalar_lea.vmem %s5, %s48
      %s50 = sld [smem:[#allocation4]]
    $region17: #{tpu_custom_call.1} parent=1 // pred_fallthru
      _
    %s51 = sld [smem:[#allocation3]]
    %s52 = smul.u32 16, %s51
    %p53 = scmp.lt.s32.totalorder %s52, 15
    %s54 = scalar_select %p53, %s52, 15
    %s55 = smul.addr %s54, 8
    %s56 = scalar_lea.vmem %s2, %s55
    %s57 = sld [smem:[#allocation4]]
    %s58 = smul.u32 16, %s57
    %p59 = scmp.lt.s32.totalorder %s58, 15
    %s60 = scalar_select %p59, %s58, 15
    %s61 = smul.addr %s60, 8
    %s62 = scalar_lea.vmem %s3, %s61
    %s63 = sld [smem:[#allocation3]]
    %s64 = smul.u32 16, %s63
    %p65 = scmp.lt.s32.totalorder %s64, 15
    %s66 = scalar_select %p65, %s64, 15
    %s67 = smul.addr %s66, 8
    %s68 = scalar_lea.vmem %s4, %s67
    %s69 = sld [smem:[#allocation4]]
    %p70 = scmp.lt.s32.totalorder %s69, 0
    %s71 = scalar_select %p70, %s69, 0
    %s72 = scalar_lea.vmem %s5, %s71
    %s73 = sld [smem:[#allocation3]]
    %s74 = smul.u32 16, %s73
    %p75 = scmp.lt.s32.totalorder %s74, 15
    %s76 = scalar_select %p75, %s74, 15
    %s77 = smul.addr %s76, 8
    %s78 = scalar_lea.vmem %s2, %s77
    %s79 = sld [smem:[#allocation3]]
    %s80 = smul.u32 16, %s79
    %s81 = sld [smem:[#allocation4]]
    %s82 = smul.u32 16, %s81
    %p83 = scmp.lt.s32.totalorder %s82, 15
    %s84 = scalar_select %p83, %s82, 15
    %s85 = smul.addr %s84, 8
    %s86 = scalar_lea.vmem %s3, %s85
    %s87 = sld [smem:[#allocation4]]
    %s88 = smul.u32 16, %s87
    %s89 = sld [smem:[#allocation3]]
    %s90 = smul.u32 16, %s89
    %p91 = scmp.lt.s32.totalorder %s90, 15
    %s92 = scalar_select %p91, %s90, 15
    %s93 = smul.addr %s92, 8
    %s94 = scalar_lea.vmem %s4, %s93
    %s95 = sld [smem:[#allocation3]]
    %s96 = smul.u32 16, %s95
    %s97 = sld [smem:[#allocation4]]
    %p98 = scmp.lt.s32.totalorder %s97, 0
    %s99 = scalar_select %p98, %s97, 0
    %s100 = scalar_lea.vmem %s5, %s99
    %s101 = sld [smem:[#allocation4]]
    %p102 = scmp.eq.s32.totalorder 0, 0
    // Predicated region
    $region18: #{tpu_custom_call.1} parent=1 // pred_check
      %p103 = pneg %p102
    $region19: #{tpu_custom_call.1} parent=1 // pred_check_branch
      %105 = sbr.rel (%p103) target = $region21
    $region20: #{tpu_custom_call.1} parent=1 // pred_region
      %106 = vst [vmem:[#allocation5] sm:$0xff] 0.0
    $region21: #{tpu_custom_call.1} parent=1 // pred_fallthru
      _
    %v107 = vld [vmem:[%s86] sm:$0xff]
    %v108 = vld [vmem:[%s86 + $0x8] sm:$0xff]
    %v109 = vld [vmem:[%s86 + $0x10] sm:$0xff]
    %v110 = vld [vmem:[%s86 + $0x18] sm:$0xff]
    %v111 = vld [vmem:[%s86 + $0x20] sm:$0xff]
    %v112 = vld [vmem:[%s86 + $0x28] sm:$0xff]
    %v113 = vld [vmem:[%s86 + $0x30] sm:$0xff]
    %v114 = vld [vmem:[%s86 + $0x38] sm:$0xff]
    %v115 = vld [vmem:[%s86 + $0x40] sm:$0xff]
    %v116 = vld [vmem:[%s86 + $0x48] sm:$0xff]
    %v117 = vld [vmem:[%s86 + $0x50] sm:$0xff]
    %v118 = vld [vmem:[%s86 + $0x58] sm:$0xff]
    %v119 = vld [vmem:[%s86 + $0x60] sm:$0xff]
    %v120 = vld [vmem:[%s86 + $0x68] sm:$0xff]
    %v121 = vld [vmem:[%s86 + $0x70] sm:$0xff]
    %v122 = vld [vmem:[%s86 + $0x78] sm:$0xff]
    %v123 = vld [vmem:[%s100] sm:$0x1]
    %v124 = vld [vmem:[%s78] sm:$0xff]
    %v125 = vld [vmem:[%s78 + $0x8] sm:$0xff]
    %v126 = vld [vmem:[%s78 + $0x10] sm:$0xff]
    %v127 = vld [vmem:[%s78 + $0x18] sm:$0xff]
    %v128 = vld [vmem:[%s78 + $0x20] sm:$0xff]
    %v129 = vld [vmem:[%s78 + $0x28] sm:$0xff]
    %v130 = vld [vmem:[%s78 + $0x30] sm:$0xff]
    %v131 = vld [vmem:[%s78 + $0x38] sm:$0xff]
    %v132 = vld [vmem:[%s78 + $0x40] sm:$0xff]
    %v133 = vld [vmem:[%s78 + $0x48] sm:$0xff]
    %v134 = vld [vmem:[%s78 + $0x50] sm:$0xff]
    %v135 = vld [vmem:[%s78 + $0x58] sm:$0xff]
    %v136 = vld [vmem:[%s78 + $0x60] sm:$0xff]
    %v137 = vld [vmem:[%s78 + $0x68] sm:$0xff]
    %v138 = vld [vmem:[%s78 + $0x70] sm:$0xff]
    %v139 = vld [vmem:[%s78 + $0x78] sm:$0xff]
    %v140 = vld [vmem:[%s94] sm:$0xff]
    %v141 = vld [vmem:[%s94 + $0x8] sm:$0xff]
    %v142 = vld [vmem:[%s94 + $0x10] sm:$0xff]
    %v143 = vld [vmem:[%s94 + $0x18] sm:$0xff]
    %v144 = vld [vmem:[%s94 + $0x20] sm:$0xff]
    %v145 = vld [vmem:[%s94 + $0x28] sm:$0xff]
    %v146 = vld [vmem:[%s94 + $0x30] sm:$0xff]
    %v147 = vld [vmem:[%s94 + $0x38] sm:$0xff]
    %v148 = vld [vmem:[%s94 + $0x40] sm:$0xff]
    %v149 = vld [vmem:[%s94 + $0x48] sm:$0xff]
    %v150 = vld [vmem:[%s94 + $0x50] sm:$0xff]
    %v151 = vld [vmem:[%s94 + $0x58] sm:$0xff]
    %v152 = vld [vmem:[%s94 + $0x60] sm:$0xff]
    %v153 = vld [vmem:[%s94 + $0x68] sm:$0xff]
    %v154 = vld [vmem:[%s94 + $0x70] sm:$0xff]
    %v155 = vld [vmem:[%s94 + $0x78] sm:$0xff]
    %vm156 = vcmask 261120
    %v158 = vsel %vm156, %v124, 0
    %v161 = vsel %vm156, %v125, 0
    %v164 = vsel %vm156, %v126, 0
    %v167 = vsel %vm156, %v127, 0
    %v170 = vsel %vm156, %v128, 0
    %v173 = vsel %vm156, %v129, 0
    %v176 = vsel %vm156, %v130, 0
    %v179 = vsel %vm156, %v131, 0
    %v182 = vsel %vm156, %v132, 0
    %v185 = vsel %vm156, %v133, 0
    %v188 = vsel %vm156, %v134, 0
    %v191 = vsel %vm156, %v135, 0
    %v194 = vsel %vm156, %v136, 0
    %v197 = vsel %vm156, %v137, 0
    %v200 = vsel %vm156, %v138, 0
    %v203 = vsel %vm156, %v139, 0
    %v206 = vsel %vm156, %v107, 0
    %v209 = vsel %vm156, %v108, 0
    %v212 = vsel %vm156, %v109, 0
    %v215 = vsel %vm156, %v110, 0
    %v218 = vsel %vm156, %v111, 0
    %v221 = vsel %vm156, %v112, 0
    %v224 = vsel %vm156, %v113, 0
    %v227 = vsel %vm156, %v114, 0
    %v230 = vsel %vm156, %v115, 0
    %v233 = vsel %vm156, %v116, 0
    %v236 = vsel %vm156, %v117, 0
    %v239 = vsel %vm156, %v118, 0
    %v242 = vsel %vm156, %v119, 0
    %v245 = vsel %vm156, %v120, 0
    %v248 = vsel %vm156, %v121, 0
    %v251 = vsel %vm156, %v122, 0
    %253 = vmatprep.subr.mxu0 0.0
    %254 = vmatpush1.xpose.msra.mxu0 %v206
    %255 = vmatprep.subr.mxu0 0.0
    %256 = vmatpush1.xpose.msra.mxu0 %v209
    %257 = vmatprep.subr.mxu0 0.0
    %258 = vmatpush1.xpose.msra.mxu0 %v212
    %259 = vmatprep.subr.mxu0 0.0
    %260 = vmatpush1.xpose.msra.mxu0 %v215
    %261 = vmatprep.subr.mxu0 0.0
    %262 = vmatpush1.xpose.msra.mxu0 %v218
    %263 = vmatprep.subr.mxu0 0.0
    %264 = vmatpush1.xpose.msra.mxu0 %v221
    %265 = vmatprep.subr.mxu0 0.0
    %266 = vmatpush1.xpose.msra.mxu0 %v224
    %267 = vmatprep.subr.mxu0 0.0
    %268 = vmatpush1.xpose.msra.mxu0 %v227
    %269 = vmatprep.subr.mxu0 0.0
    %270 = vmatpush1.xpose.msra.mxu0 %v230
    %271 = vmatprep.subr.mxu0 0.0
    %272 = vmatpush1.xpose.msra.mxu0 %v233
    %273 = vmatprep.subr.mxu0 0.0
    %274 = vmatpush1.xpose.msra.mxu0 %v236
    %275 = vmatprep.subr.mxu0 0.0
    %276 = vmatpush1.xpose.msra.mxu0 %v239
    %277 = vmatprep.subr.mxu0 0.0
    %278 = vmatpush1.xpose.msra.mxu0 %v242
    %279 = vmatprep.subr.mxu0 0.0
    %280 = vmatpush1.xpose.msra.mxu0 %v245
    %281 = vmatprep.subr.mxu0 0.0
    %282 = vmatpush1.xpose.msra.mxu0 %v248
    %283 = vmatprep.subr.mxu0 0.0
    %284 = vmatpush1.xpose.msra.mxu0 %v251
    %285 = vmatprep.subr.mxu0 0.0
    %286 = vmatpush1.xpose.msra.mxu0 0.0
    %287 = vmatprep.subr.mxu0 0.0
    %288 = vmatpush1.xpose.msra.mxu0 0.0
    %289 = vmatprep.subr.mxu0 0.0
    %290 = vmatpush1.xpose.msra.mxu0 0.0
    %291 = vmatprep.subr.mxu0 0.0
    %292 = vmatpush1.xpose.msra.mxu0 0.0
    %293 = vmatprep.subr.mxu0 0.0
    %294 = vmatpush1.xpose.msra.mxu0 0.0
    %295 = vmatprep.subr.mxu0 0.0
    %296 = vmatpush1.xpose.msra.mxu0 0.0
    %297 = vmatprep.subr.mxu0 0.0
    %298 = vmatpush1.xpose.msra.mxu0 0.0
    %299 = vmatprep.subr.mxu0 0.0
    %300 = vmatpush1.xpose.msra.mxu0 0.0
    %301 = vmatprep.subr.mxu0 0.0
    %302 = vmatpush1.xpose.msra.mxu0 0.0
    %303 = vmatprep.subr.mxu0 0.0
    %304 = vmatpush1.xpose.msra.mxu0 0.0
    %305 = vmatprep.subr.mxu0 0.0
    %306 = vmatpush1.xpose.msra.mxu0 0.0
    %307 = vmatprep.subr.mxu0 0.0
    %308 = vmatpush1.xpose.msra.mxu0 0.0
    %309 = vmatprep.subr.mxu0 0.0
    %310 = vmatpush1.xpose.msra.mxu0 0.0
    %311 = vmatprep.subr.mxu0 0.0
    %312 = vmatpush1.xpose.msra.mxu0 0.0
    %313 = vmatprep.subr.mxu0 0.0
    %314 = vmatpush1.xpose.msra.mxu0 0.0
    %315 = vmatprep.subr.mxu0 0.0
    %316 = vmatpush1.xpose.msra.mxu0 0.0
    %317 = vmatprep.mubr.f32.mxu0 0.0
    %318 = vmatmul.mubr.f32.gmra.mrb[0].mxu0 %v158
    %v319 = vpop.f32.mrb[0].mxu0
    %v320 = vadd.f32 0.0, %v319
    %v321 = vpop.f32.mrb[0].mxu0
    %322 = vmatprep.mubr.f32.mxu0 0.0
    %323 = vmatmul.mubr.f32.gmra.mrb[0].mxu0 %v161
    %v324 = vpop.f32.mrb[0].mxu0
    %v325 = vadd.f32 0.0, %v324
    %v326 = vpop.f32.mrb[0].mxu0
    %327 = vmatprep.mubr.f32.mxu0 0.0
    %328 = vmatmul.mubr.f32.gmra.mrb[0].mxu0 %v164
    %v329 = vpop.f32.mrb[0].mxu0
    %v330 = vadd.f32 0.0, %v329
    %v331 = vpop.f32.mrb[0].mxu0
    %332 = vmatprep.mubr.f32.mxu0 0.0
    %333 = vmatmul.mubr.f32.gmra.mrb[0].mxu0 %v167
    %v334 = vpop.f32.mrb[0].mxu0
    %v335 = vadd.f32 0.0, %v334
    %v336 = vpop.f32.mrb[0].mxu0
    %337 = vmatprep.mubr.f32.mxu0 0.0
    %338 = vmatmul.mubr.f32.gmra.mrb[0].mxu0 %v170
    %v339 = vpop.f32.mrb[0].mxu0
    %v340 = vadd.f32 0.0, %v339
    %v341 = vpop.f32.mrb[0].mxu0
    %342 = vmatprep.mubr.f32.mxu0 0.0
    %343 = vmatmul.mubr.f32.gmra.mrb[0].mxu0 %v173
    %v344 = vpop.f32.mrb[0].mxu0
    %v345 = vadd.f32 0.0, %v344
    %v346 = vpop.f32.mrb[0].mxu0
    %347 = vmatprep.mubr.f32.mxu0 0.0
    %348 = vmatmul.mubr.f32.gmra.mrb[0].mxu0 %v176
    %v349 = vpop.f32.mrb[0].mxu0
    %v350 = vadd.f32 0.0, %v349
    %v351 = vpop.f32.mrb[0].mxu0
    %352 = vmatprep.mubr.f32.mxu0 0.0
    %353 = vmatmul.mubr.f32.gmra.mrb[0].mxu0 %v179
    %v354 = vpop.f32.mrb[0].mxu0
    %v355 = vadd.f32 0.0, %v354
    %v356 = vpop.f32.mrb[0].mxu0
    %357 = vmatprep.mubr.f32.mxu0 0.0
    %358 = vmatmul.mubr.f32.gmra.mrb[0].mxu0 %v182
    %v359 = vpop.f32.mrb[0].mxu0
    %v360 = vadd.f32 0.0, %v359
    %v361 = vpop.f32.mrb[0].mxu0
    %362 = vmatprep.mubr.f32.mxu0 0.0
    %363 = vmatmul.mubr.f32.gmra.mrb[0].mxu0 %v185
    %v364 = vpop.f32.mrb[0].mxu0
    %v365 = vadd.f32 0.0, %v364
    %v366 = vpop.f32.mrb[0].mxu0
    %367 = vmatprep.mubr.f32.mxu0 0.0
    %368 = vmatmul.mubr.f32.gmra.mrb[0].mxu0 %v188
    %v369 = vpop.f32.mrb[0].mxu0
    %v370 = vadd.f32 0.0, %v369
    %v371 = vpop.f32.mrb[0].mxu0
    %372 = vmatprep.mubr.f32.mxu0 0.0
    %373 = vmatmul.mubr.f32.gmra.mrb[0].mxu0 %v191
    %v374 = vpop.f32.mrb[0].mxu0
    %v375 = vadd.f32 0.0, %v374
    %v376 = vpop.f32.mrb[0].mxu0
    %377 = vmatprep.mubr.f32.mxu0 0.0
    %378 = vmatmul.mubr.f32.gmra.mrb[0].mxu0 %v194
    %v379 = vpop.f32.mrb[0].mxu0
    %v380 = vadd.f32 0.0, %v379
    %v381 = vpop.f32.mrb[0].mxu0
    %382 = vmatprep.mubr.f32.mxu0 0.0
    %383 = vmatmul.mubr.f32.gmra.mrb[0].mxu0 %v197
    %v384 = vpop.f32.mrb[0].mxu0
    %v385 = vadd.f32 0.0, %v384
    %v386 = vpop.f32.mrb[0].mxu0
    %387 = vmatprep.mubr.f32.mxu0 0.0
    %388 = vmatmul.mubr.f32.gmra.mrb[0].mxu0 %v200
    %v389 = vpop.f32.mrb[0].mxu0
    %v390 = vadd.f32 0.0, %v389
    %v391 = vpop.f32.mrb[0].mxu0
    %392 = vmatprep.mubr.f32.mxu0 0.0
    %393 = vmatmul.mubr.f32.gmra.mrb[0].mxu0 %v203
    %v394 = vpop.f32.mrb[0].mxu0
    %v395 = vadd.f32 0.0, %v394
    %v396 = vpop.f32.mrb[0].mxu0
    %397 = vdwg.mxu0
    %398 = vset.pattern.permute.xlu0 0
    %399 = vperm.xlu0 %398, %v140
    %v400 = vpop.permute.xlu0 %399
    %401 = vset.pattern.permute.xlu0 0
    %402 = vperm.xlu0 %401, %v141
    %v403 = vpop.permute.xlu0 %402
    %404 = vset.pattern.permute.xlu0 0
    %405 = vperm.xlu0 %404, %v142
    %v406 = vpop.permute.xlu0 %405
    %407 = vset.pattern.permute.xlu0 0
    %408 = vperm.xlu0 %407, %v143
    %v409 = vpop.permute.xlu0 %408
    %410 = vset.pattern.permute.xlu0 0
    %411 = vperm.xlu0 %410, %v144
    %v412 = vpop.permute.xlu0 %411
    %413 = vset.pattern.permute.xlu0 0
    %414 = vperm.xlu0 %413, %v145
    %v415 = vpop.permute.xlu0 %414
    %416 = vset.pattern.permute.xlu0 0
    %417 = vperm.xlu0 %416, %v146
    %v418 = vpop.permute.xlu0 %417
    %419 = vset.pattern.permute.xlu0 0
    %420 = vperm.xlu0 %419, %v147
    %v421 = vpop.permute.xlu0 %420
    %422 = vset.pattern.permute.xlu0 0
    %423 = vperm.xlu0 %422, %v148
    %v424 = vpop.permute.xlu0 %423
    %425 = vset.pattern.permute.xlu0 0
    %426 = vperm.xlu0 %425, %v149
    %v427 = vpop.permute.xlu0 %426
    %428 = vset.pattern.permute.xlu0 0
    %429 = vperm.xlu0 %428, %v150
    %v430 = vpop.permute.xlu0 %429
    %431 = vset.pattern.permute.xlu0 0
    %432 = vperm.xlu0 %431, %v151
    %v433 = vpop.permute.xlu0 %432
    %434 = vset.pattern.permute.xlu0 0
    %435 = vperm.xlu0 %434, %v152
    %v436 = vpop.permute.xlu0 %435
    %437 = vset.pattern.permute.xlu0 0
    %438 = vperm.xlu0 %437, %v153
    %v439 = vpop.permute.xlu0 %438
    %440 = vset.pattern.permute.xlu0 0
    %441 = vperm.xlu0 %440, %v154
    %v442 = vpop.permute.xlu0 %441
    %443 = vset.pattern.permute.xlu0 0
    %444 = vperm.xlu0 %443, %v155
    %v445 = vpop.permute.xlu0 %444
    %v446 = vlaneseq
    %v447 = vshrl.u32 %v446, 7
    %v448 = vsub.s32 0, %v447
    %v449 = vrot.slane %v123, %v448
    %v450 = vadd.s32 %v400, %v449
    %v451 = vadd.s32 %v403, %v449
    %v452 = vadd.s32 %v406, %v449
    %v453 = vadd.s32 %v409, %v449
    %v454 = vadd.s32 %v412, %v449
    %v455 = vadd.s32 %v415, %v449
    %v456 = vadd.s32 %v418, %v449
    %v457 = vadd.s32 %v421, %v449
    %v458 = vadd.s32 %v424, %v449
    %v459 = vadd.s32 %v427, %v449
    %v460 = vadd.s32 %v430, %v449
    %v461 = vadd.s32 %v433, %v449
    %v462 = vadd.s32 %v436, %v449
    %v463 = vadd.s32 %v439, %v449
    %v464 = vadd.s32 %v442, %v449
    %v465 = vadd.s32 %v445, %v449
    %vm466 = vcmp.ne.s32.totalorder %v450, 1
    %vm467 = vcmp.ne.s32.totalorder %v451, 1
    %vm468 = vcmp.ne.s32.totalorder %v452, 1
    %vm469 = vcmp.ne.s32.totalorder %v453, 1
    %vm470 = vcmp.ne.s32.totalorder %v454, 1
    %vm471 = vcmp.ne.s32.totalorder %v455, 1
    %vm472 = vcmp.ne.s32.totalorder %v456, 1
    %vm473 = vcmp.ne.s32.totalorder %v457, 1
    %vm474 = vcmp.ne.s32.totalorder %v458, 1
    %vm475 = vcmp.ne.s32.totalorder %v459, 1
    %vm476 = vcmp.ne.s32.totalorder %v460, 1
    %vm477 = vcmp.ne.s32.totalorder %v461, 1
    %vm478 = vcmp.ne.s32.totalorder %v462, 1
    %vm479 = vcmp.ne.s32.totalorder %v463, 1
    %vm480 = vcmp.ne.s32.totalorder %v464, 1
    %vm481 = vcmp.ne.s32.totalorder %v465, 1
    %v482 = vsub.f32 1.0, %v320
    %v483 = vsub.f32 1.0, %v325
    %v484 = vsub.f32 1.0, %v330
    %v485 = vsub.f32 1.0, %v335
    %v486 = vsub.f32 1.0, %v340
    %v487 = vsub.f32 1.0, %v345
    %v488 = vsub.f32 1.0, %v350
    %v489 = vsub.f32 1.0, %v355
    %v490 = vsub.f32 1.0, %v360
    %v491 = vsub.f32 1.0, %v365
    %v492 = vsub.f32 1.0, %v370
    %v493 = vsub.f32 1.0, %v375
    %v494 = vsub.f32 1.0, %v380
    %v495 = vsub.f32 1.0, %v385
    %v496 = vsub.f32 1.0, %v390
    %v497 = vsub.f32 1.0, %v395
    %v498 = vsub.f32 %v320, 0.3
    %v499 = vsub.f32 %v325, 0.3
    %v500 = vsub.f32 %v330, 0.3
    %v501 = vsub.f32 %v335, 0.3
    %v502 = vsub.f32 %v340, 0.3
    %v503 = vsub.f32 %v345, 0.3
    %v504 = vsub.f32 %v350, 0.3
    %v505 = vsub.f32 %v355, 0.3
    %v506 = vsub.f32 %v360, 0.3
    %v507 = vsub.f32 %v365, 0.3
    %v508 = vsub.f32 %v370, 0.3
    %v509 = vsub.f32 %v375, 0.3
    %v510 = vsub.f32 %v380, 0.3
    %v511 = vsub.f32 %v385, 0.3
    %v512 = vsub.f32 %v390, 0.3
    %v513 = vsub.f32 %v395, 0.3
    %v514 = vmax.f32 %v498, 0.0
    %v515 = vmax.f32 %v499, 0.0
    %v516 = vmax.f32 %v500, 0.0
    %v517 = vmax.f32 %v501, 0.0
    %v518 = vmax.f32 %v502, 0.0
    %v519 = vmax.f32 %v503, 0.0
    %v520 = vmax.f32 %v504, 0.0
    %v521 = vmax.f32 %v505, 0.0
    %v522 = vmax.f32 %v506, 0.0
    %v523 = vmax.f32 %v507, 0.0
    %v524 = vmax.f32 %v508, 0.0
    %v525 = vmax.f32 %v509, 0.0
    %v526 = vmax.f32 %v510, 0.0
    %v527 = vmax.f32 %v511, 0.0
    %v528 = vmax.f32 %v512, 0.0
    %v529 = vmax.f32 %v513, 0.0
    %v530 = vsel %vm466, %v482, %v514
    %v531 = vsel %vm467, %v483, %v515
    %v532 = vsel %vm468, %v484, %v516
    %v533 = vsel %vm469, %v485, %v517
    %v534 = vsel %vm470, %v486, %v518
    %v535 = vsel %vm471, %v487, %v519
    %v536 = vsel %vm472, %v488, %v520
    %v537 = vsel %vm473, %v489, %v521
    %v538 = vsel %vm474, %v490, %v522
    %v539 = vsel %vm475, %v491, %v523
    %v540 = vsel %vm476, %v492, %v524
    %v541 = vsel %vm477, %v493, %v525
    %v542 = vsel %vm478, %v494, %v526
    %v543 = vsel %vm479, %v495, %v527
    %v544 = vsel %vm480, %v496, %v528
    %v545 = vsel %vm481, %v497, %v529
    %v562 = vcombine.high %v530, %v530
    %v564 = vunpack.c.l.s4 1966171168
    %v565 = vunpack.c.0.s8 %v564
    %v566 = vlaneseq
    %v567 = vshrl.u32 %v566, 7
    %v568 = vsub.s32 %v565, %v567
    %v569 = vrot.slane %v530, %v568
    %v571 = vunpack.c.l.s4 1966171168
    %v572 = vunpack.c.0.s8 %v571
    %v573 = vlaneseq
    %v574 = vshrl.u32 %v573, 7
    %v575 = vsub.s32 %v572, %v574
    %v576 = vrot.slane %v562, %v575
    %v577 = vcombine.high %v569, %v569
    %v578 = vcombine.high %v576, %v576
    %v580 = vunpack.c.l.s4 1966171168
    %v581 = vunpack.c.0.s8 %v580
    %v582 = vlaneseq
    %v583 = vshrl.u32 %v582, 7
    %v584 = vsub.s32 %v581, %v583
    %v585 = vrot.slane %v569, %v584
    %v587 = vunpack.c.l.s4 1966171168
    %v588 = vunpack.c.0.s8 %v587
    %v589 = vlaneseq
    %v590 = vshrl.u32 %v589, 7
    %v591 = vsub.s32 %v588, %v590
    %v592 = vrot.slane %v576, %v591
    %v594 = vunpack.c.l.s4 1966171168
    %v595 = vunpack.c.0.s8 %v594
    %v596 = vlaneseq
    %v597 = vshrl.u32 %v596, 7
    %v598 = vsub.s32 %v595, %v597
    %v599 = vrot.slane %v577, %v598
    %v601 = vunpack.c.l.s4 1966171168
    %v602 = vunpack.c.0.s8 %v601
    %v603 = vlaneseq
    %v604 = vshrl.u32 %v603, 7
    %v605 = vsub.s32 %v602, %v604
    %v606 = vrot.slane %v578, %v605
    %v607 = vcombine.high %v585, %v585
    %v608 = vcombine.high %v592, %v592
    %v609 = vcombine.high %v599, %v599
    %v610 = vcombine.high %v606, %v606
    %v611 = vcombine.high %v531, %v531
    %v613 = vunpack.c.l.s4 1966171168
    %v614 = vunpack.c.0.s8 %v613
    %v615 = vlaneseq
    %v616 = vshrl.u32 %v615, 7
    %v617 = vsub.s32 %v614, %v616
    %v618 = vrot.slane %v531, %v617
    %v620 = vunpack.c.l.s4 1966171168
    %v621 = vunpack.c.0.s8 %v620
    %v622 = vlaneseq
    %v623 = vshrl.u32 %v622, 7
    %v624 = vsub.s32 %v621, %v623
    %v625 = vrot.slane %v611, %v624
    %v626 = vcombine.high %v618, %v618
    %v627 = vcombine.high %v625, %v625
    %v629 = vunpack.c.l.s4 1966171168
    %v630 = vunpack.c.0.s8 %v629
    %v631 = vlaneseq
    %v632 = vshrl.u32 %v631, 7
    %v633 = vsub.s32 %v630, %v632
    %v634 = vrot.slane %v618, %v633
    %v636 = vunpack.c.l.s4 1966171168
    %v637 = vunpack.c.0.s8 %v636
    %v638 = vlaneseq
    %v639 = vshrl.u32 %v638, 7
    %v640 = vsub.s32 %v637, %v639
    %v641 = vrot.slane %v625, %v640
    %v643 = vunpack.c.l.s4 1966171168
    %v644 = vunpack.c.0.s8 %v643
    %v645 = vlaneseq
    %v646 = vshrl.u32 %v645, 7
    %v647 = vsub.s32 %v644, %v646
    %v648 = vrot.slane %v626, %v647
    %v650 = vunpack.c.l.s4 1966171168
    %v651 = vunpack.c.0.s8 %v650
    %v652 = vlaneseq
    %v653 = vshrl.u32 %v652, 7
    %v654 = vsub.s32 %v651, %v653
    %v655 = vrot.slane %v627, %v654
    %v656 = vcombine.high %v634, %v634
    %v657 = vcombine.high %v641, %v641
    %v658 = vcombine.high %v648, %v648
    %v659 = vcombine.high %v655, %v655
    %v660 = vcombine.high %v532, %v532
    %v662 = vunpack.c.l.s4 1966171168
    %v663 = vunpack.c.0.s8 %v662
    %v664 = vlaneseq
    %v665 = vshrl.u32 %v664, 7
    %v666 = vsub.s32 %v663, %v665
    %v667 = vrot.slane %v532, %v666
    %v669 = vunpack.c.l.s4 1966171168
    %v670 = vunpack.c.0.s8 %v669
    %v671 = vlaneseq
    %v672 = vshrl.u32 %v671, 7
    %v673 = vsub.s32 %v670, %v672
    %v674 = vrot.slane %v660, %v673
    %v675 = vcombine.high %v667, %v667
    %v676 = vcombine.high %v674, %v674
    %v678 = vunpack.c.l.s4 1966171168
    %v679 = vunpack.c.0.s8 %v678
    %v680 = vlaneseq
    %v681 = vshrl.u32 %v680, 7
    %v682 = vsub.s32 %v679, %v681
    %v683 = vrot.slane %v667, %v682
    %v685 = vunpack.c.l.s4 1966171168
    %v686 = vunpack.c.0.s8 %v685
    %v687 = vlaneseq
    %v688 = vshrl.u32 %v687, 7
    %v689 = vsub.s32 %v686, %v688
    %v690 = vrot.slane %v674, %v689
    %v692 = vunpack.c.l.s4 1966171168
    %v693 = vunpack.c.0.s8 %v692
    %v694 = vlaneseq
    %v695 = vshrl.u32 %v694, 7
    %v696 = vsub.s32 %v693, %v695
    %v697 = vrot.slane %v675, %v696
    %v699 = vunpack.c.l.s4 1966171168
    %v700 = vunpack.c.0.s8 %v699
    %v701 = vlaneseq
    %v702 = vshrl.u32 %v701, 7
    %v703 = vsub.s32 %v700, %v702
    %v704 = vrot.slane %v676, %v703
    %v705 = vcombine.high %v683, %v683
    %v706 = vcombine.high %v690, %v690
    %v707 = vcombine.high %v697, %v697
    %v708 = vcombine.high %v704, %v704
    %v709 = vcombine.high %v533, %v533
    %v711 = vunpack.c.l.s4 1966171168
    %v712 = vunpack.c.0.s8 %v711
    %v713 = vlaneseq
    %v714 = vshrl.u32 %v713, 7
    %v715 = vsub.s32 %v712, %v714
    %v716 = vrot.slane %v533, %v715
    %v718 = vunpack.c.l.s4 1966171168
    %v719 = vunpack.c.0.s8 %v718
    %v720 = vlaneseq
    %v721 = vshrl.u32 %v720, 7
    %v722 = vsub.s32 %v719, %v721
    %v723 = vrot.slane %v709, %v722
    %v724 = vcombine.high %v716, %v716
    %v725 = vcombine.high %v723, %v723
    %v727 = vunpack.c.l.s4 1966171168
    %v728 = vunpack.c.0.s8 %v727
    %v729 = vlaneseq
    %v730 = vshrl.u32 %v729, 7
    %v731 = vsub.s32 %v728, %v730
    %v732 = vrot.slane %v716, %v731
    %v734 = vunpack.c.l.s4 1966171168
    %v735 = vunpack.c.0.s8 %v734
    %v736 = vlaneseq
    %v737 = vshrl.u32 %v736, 7
    %v738 = vsub.s32 %v735, %v737
    %v739 = vrot.slane %v723, %v738
    %v741 = vunpack.c.l.s4 1966171168
    %v742 = vunpack.c.0.s8 %v741
    %v743 = vlaneseq
    %v744 = vshrl.u32 %v743, 7
    %v745 = vsub.s32 %v742, %v744
    %v746 = vrot.slane %v724, %v745
    %v748 = vunpack.c.l.s4 1966171168
    %v749 = vunpack.c.0.s8 %v748
    %v750 = vlaneseq
    %v751 = vshrl.u32 %v750, 7
    %v752 = vsub.s32 %v749, %v751
    %v753 = vrot.slane %v725, %v752
    %v754 = vcombine.high %v732, %v732
    %v755 = vcombine.high %v739, %v739
    %v756 = vcombine.high %v746, %v746
    %v757 = vcombine.high %v753, %v753
    %v758 = vcombine.high %v534, %v534
    %v760 = vunpack.c.l.s4 1966171168
    %v761 = vunpack.c.0.s8 %v760
    %v762 = vlaneseq
    %v763 = vshrl.u32 %v762, 7
    %v764 = vsub.s32 %v761, %v763
    %v765 = vrot.slane %v534, %v764
    %v767 = vunpack.c.l.s4 1966171168
    %v768 = vunpack.c.0.s8 %v767
    %v769 = vlaneseq
    %v770 = vshrl.u32 %v769, 7
    %v771 = vsub.s32 %v768, %v770
    %v772 = vrot.slane %v758, %v771
    %v773 = vcombine.high %v765, %v765
    %v774 = vcombine.high %v772, %v772
    %v776 = vunpack.c.l.s4 1966171168
    %v777 = vunpack.c.0.s8 %v776
    %v778 = vlaneseq
    %v779 = vshrl.u32 %v778, 7
    %v780 = vsub.s32 %v777, %v779
    %v781 = vrot.slane %v765, %v780
    %v783 = vunpack.c.l.s4 1966171168
    %v784 = vunpack.c.0.s8 %v783
    %v785 = vlaneseq
    %v786 = vshrl.u32 %v785, 7
    %v787 = vsub.s32 %v784, %v786
    %v788 = vrot.slane %v772, %v787
    %v790 = vunpack.c.l.s4 1966171168
    %v791 = vunpack.c.0.s8 %v790
    %v792 = vlaneseq
    %v793 = vshrl.u32 %v792, 7
    %v794 = vsub.s32 %v791, %v793
    %v795 = vrot.slane %v773, %v794
    %v797 = vunpack.c.l.s4 1966171168
    %v798 = vunpack.c.0.s8 %v797
    %v799 = vlaneseq
    %v800 = vshrl.u32 %v799, 7
    %v801 = vsub.s32 %v798, %v800
    %v802 = vrot.slane %v774, %v801
    %v803 = vcombine.high %v781, %v781
    %v804 = vcombine.high %v788, %v788
    %v805 = vcombine.high %v795, %v795
    %v806 = vcombine.high %v802, %v802
    %v807 = vcombine.high %v535, %v535
    %v809 = vunpack.c.l.s4 1966171168
    %v810 = vunpack.c.0.s8 %v809
    %v811 = vlaneseq
    %v812 = vshrl.u32 %v811, 7
    %v813 = vsub.s32 %v810, %v812
    %v814 = vrot.slane %v535, %v813
    %v816 = vunpack.c.l.s4 1966171168
    %v817 = vunpack.c.0.s8 %v816
    %v818 = vlaneseq
    %v819 = vshrl.u32 %v818, 7
    %v820 = vsub.s32 %v817, %v819
    %v821 = vrot.slane %v807, %v820
    %v822 = vcombine.high %v814, %v814
    %v823 = vcombine.high %v821, %v821
    %v825 = vunpack.c.l.s4 1966171168
    %v826 = vunpack.c.0.s8 %v825
    %v827 = vlaneseq
    %v828 = vshrl.u32 %v827, 7
    %v829 = vsub.s32 %v826, %v828
    %v830 = vrot.slane %v814, %v829
    %v832 = vunpack.c.l.s4 1966171168
    %v833 = vunpack.c.0.s8 %v832
    %v834 = vlaneseq
    %v835 = vshrl.u32 %v834, 7
    %v836 = vsub.s32 %v833, %v835
    %v837 = vrot.slane %v821, %v836
    %v839 = vunpack.c.l.s4 1966171168
    %v840 = vunpack.c.0.s8 %v839
    %v841 = vlaneseq
    %v842 = vshrl.u32 %v841, 7
    %v843 = vsub.s32 %v840, %v842
    %v844 = vrot.slane %v822, %v843
    %v846 = vunpack.c.l.s4 1966171168
    %v847 = vunpack.c.0.s8 %v846
    %v848 = vlaneseq
    %v849 = vshrl.u32 %v848, 7
    %v850 = vsub.s32 %v847, %v849
    %v851 = vrot.slane %v823, %v850
    %v852 = vcombine.high %v830, %v830
    %v853 = vcombine.high %v837, %v837
    %v854 = vcombine.high %v844, %v844
    %v855 = vcombine.high %v851, %v851
    %v856 = vcombine.high %v536, %v536
    %v858 = vunpack.c.l.s4 1966171168
    %v859 = vunpack.c.0.s8 %v858
    %v860 = vlaneseq
    %v861 = vshrl.u32 %v860, 7
    %v862 = vsub.s32 %v859, %v861
    %v863 = vrot.slane %v536, %v862
    %v865 = vunpack.c.l.s4 1966171168
    %v866 = vunpack.c.0.s8 %v865
    %v867 = vlaneseq
    %v868 = vshrl.u32 %v867, 7
    %v869 = vsub.s32 %v866, %v868
    %v870 = vrot.slane %v856, %v869
    %v871 = vcombine.high %v863, %v863
    %v872 = vcombine.high %v870, %v870
    %v874 = vunpack.c.l.s4 1966171168
    %v875 = vunpack.c.0.s8 %v874
    %v876 = vlaneseq
    %v877 = vshrl.u32 %v876, 7
    %v878 = vsub.s32 %v875, %v877
    %v879 = vrot.slane %v863, %v878
    %v881 = vunpack.c.l.s4 1966171168
    %v882 = vunpack.c.0.s8 %v881
    %v883 = vlaneseq
    %v884 = vshrl.u32 %v883, 7
    %v885 = vsub.s32 %v882, %v884
    %v886 = vrot.slane %v870, %v885
    %v888 = vunpack.c.l.s4 1966171168
    %v889 = vunpack.c.0.s8 %v888
    %v890 = vlaneseq
    %v891 = vshrl.u32 %v890, 7
    %v892 = vsub.s32 %v889, %v891
    %v893 = vrot.slane %v871, %v892
    %v895 = vunpack.c.l.s4 1966171168
    %v896 = vunpack.c.0.s8 %v895
    %v897 = vlaneseq
    %v898 = vshrl.u32 %v897, 7
    %v899 = vsub.s32 %v896, %v898
    %v900 = vrot.slane %v872, %v899
    %v901 = vcombine.high %v879, %v879
    %v902 = vcombine.high %v886, %v886
    %v903 = vcombine.high %v893, %v893
    %v904 = vcombine.high %v900, %v900
    %v905 = vcombine.high %v537, %v537
    %v907 = vunpack.c.l.s4 1966171168
    %v908 = vunpack.c.0.s8 %v907
    %v909 = vlaneseq
    %v910 = vshrl.u32 %v909, 7
    %v911 = vsub.s32 %v908, %v910
    %v912 = vrot.slane %v537, %v911
    %v914 = vunpack.c.l.s4 1966171168
    %v915 = vunpack.c.0.s8 %v914
    %v916 = vlaneseq
    %v917 = vshrl.u32 %v916, 7
    %v918 = vsub.s32 %v915, %v917
    %v919 = vrot.slane %v905, %v918
    %v920 = vcombine.high %v912, %v912
    %v921 = vcombine.high %v919, %v919
    %v923 = vunpack.c.l.s4 1966171168
    %v924 = vunpack.c.0.s8 %v923
    %v925 = vlaneseq
    %v926 = vshrl.u32 %v925, 7
    %v927 = vsub.s32 %v924, %v926
    %v928 = vrot.slane %v912, %v927
    %v930 = vunpack.c.l.s4 1966171168
    %v931 = vunpack.c.0.s8 %v930
    %v932 = vlaneseq
    %v933 = vshrl.u32 %v932, 7
    %v934 = vsub.s32 %v931, %v933
    %v935 = vrot.slane %v919, %v934
    %v937 = vunpack.c.l.s4 1966171168
    %v938 = vunpack.c.0.s8 %v937
    %v939 = vlaneseq
    %v940 = vshrl.u32 %v939, 7
    %v941 = vsub.s32 %v938, %v940
    %v942 = vrot.slane %v920, %v941
    %v944 = vunpack.c.l.s4 1966171168
    %v945 = vunpack.c.0.s8 %v944
    %v946 = vlaneseq
    %v947 = vshrl.u32 %v946, 7
    %v948 = vsub.s32 %v945, %v947
    %v949 = vrot.slane %v921, %v948
    %v950 = vcombine.high %v928, %v928
    %v951 = vcombine.high %v935, %v935
    %v952 = vcombine.high %v942, %v942
    %v953 = vcombine.high %v949, %v949
    %v954 = vcombine.high %v538, %v538
    %v956 = vunpack.c.l.s4 1966171168
    %v957 = vunpack.c.0.s8 %v956
    %v958 = vlaneseq
    %v959 = vshrl.u32 %v958, 7
    %v960 = vsub.s32 %v957, %v959
    %v961 = vrot.slane %v538, %v960
    %v963 = vunpack.c.l.s4 1966171168
    %v964 = vunpack.c.0.s8 %v963
    %v965 = vlaneseq
    %v966 = vshrl.u32 %v965, 7
    %v967 = vsub.s32 %v964, %v966
    %v968 = vrot.slane %v954, %v967
    %v969 = vcombine.high %v961, %v961
    %v970 = vcombine.high %v968, %v968
    %v972 = vunpack.c.l.s4 1966171168
    %v973 = vunpack.c.0.s8 %v972
    %v974 = vlaneseq
    %v975 = vshrl.u32 %v974, 7
    %v976 = vsub.s32 %v973, %v975
    %v977 = vrot.slane %v961, %v976
    %v979 = vunpack.c.l.s4 1966171168
    %v980 = vunpack.c.0.s8 %v979
    %v981 = vlaneseq
    %v982 = vshrl.u32 %v981, 7
    %v983 = vsub.s32 %v980, %v982
    %v984 = vrot.slane %v968, %v983
    %v986 = vunpack.c.l.s4 1966171168
    %v987 = vunpack.c.0.s8 %v986
    %v988 = vlaneseq
    %v989 = vshrl.u32 %v988, 7
    %v990 = vsub.s32 %v987, %v989
    %v991 = vrot.slane %v969, %v990
    %v993 = vunpack.c.l.s4 1966171168
    %v994 = vunpack.c.0.s8 %v993
    %v995 = vlaneseq
    %v996 = vshrl.u32 %v995, 7
    %v997 = vsub.s32 %v994, %v996
    %v998 = vrot.slane %v970, %v997
    %v999 = vcombine.high %v977, %v977
    %v1000 = vcombine.high %v984, %v984
    %v1001 = vcombine.high %v991, %v991
    %v1002 = vcombine.high %v998, %v998
    %v1003 = vcombine.high %v539, %v539
    %v1005 = vunpack.c.l.s4 1966171168
    %v1006 = vunpack.c.0.s8 %v1005
    %v1007 = vlaneseq
    %v1008 = vshrl.u32 %v1007, 7
    %v1009 = vsub.s32 %v1006, %v1008
    %v1010 = vrot.slane %v539, %v1009
    %v1012 = vunpack.c.l.s4 1966171168
    %v1013 = vunpack.c.0.s8 %v1012
    %v1014 = vlaneseq
    %v1015 = vshrl.u32 %v1014, 7
    %v1016 = vsub.s32 %v1013, %v1015
    %v1017 = vrot.slane %v1003, %v1016
    %v1018 = vcombine.high %v1010, %v1010
    %v1019 = vcombine.high %v1017, %v1017
    %v1021 = vunpack.c.l.s4 1966171168
    %v1022 = vunpack.c.0.s8 %v1021
    %v1023 = vlaneseq
    %v1024 = vshrl.u32 %v1023, 7
    %v1025 = vsub.s32 %v1022, %v1024
    %v1026 = vrot.slane %v1010, %v1025
    %v1028 = vunpack.c.l.s4 1966171168
    %v1029 = vunpack.c.0.s8 %v1028
    %v1030 = vlaneseq
    %v1031 = vshrl.u32 %v1030, 7
    %v1032 = vsub.s32 %v1029, %v1031
    %v1033 = vrot.slane %v1017, %v1032
    %v1035 = vunpack.c.l.s4 1966171168
    %v1036 = vunpack.c.0.s8 %v1035
    %v1037 = vlaneseq
    %v1038 = vshrl.u32 %v1037, 7
    %v1039 = vsub.s32 %v1036, %v1038
    %v1040 = vrot.slane %v1018, %v1039
    %v1042 = vunpack.c.l.s4 1966171168
    %v1043 = vunpack.c.0.s8 %v1042
    %v1044 = vlaneseq
    %v1045 = vshrl.u32 %v1044, 7
    %v1046 = vsub.s32 %v1043, %v1045
    %v1047 = vrot.slane %v1019, %v1046
    %v1048 = vcombine.high %v1026, %v1026
    %v1049 = vcombine.high %v1033, %v1033
    %v1050 = vcombine.high %v1040, %v1040
    %v1051 = vcombine.high %v1047, %v1047
    %v1052 = vcombine.high %v540, %v540
    %v1054 = vunpack.c.l.s4 1966171168
    %v1055 = vunpack.c.0.s8 %v1054
    %v1056 = vlaneseq
    %v1057 = vshrl.u32 %v1056, 7
    %v1058 = vsub.s32 %v1055, %v1057
    %v1059 = vrot.slane %v540, %v1058
    %v1061 = vunpack.c.l.s4 1966171168
    %v1062 = vunpack.c.0.s8 %v1061
    %v1063 = vlaneseq
    %v1064 = vshrl.u32 %v1063, 7
    %v1065 = vsub.s32 %v1062, %v1064
    %v1066 = vrot.slane %v1052, %v1065
    %v1067 = vcombine.high %v1059, %v1059
    %v1068 = vcombine.high %v1066, %v1066
    %v1070 = vunpack.c.l.s4 1966171168
    %v1071 = vunpack.c.0.s8 %v1070
    %v1072 = vlaneseq
    %v1073 = vshrl.u32 %v1072, 7
    %v1074 = vsub.s32 %v1071, %v1073
    %v1075 = vrot.slane %v1059, %v1074
    %v1077 = vunpack.c.l.s4 1966171168
    %v1078 = vunpack.c.0.s8 %v1077
    %v1079 = vlaneseq
    %v1080 = vshrl.u32 %v1079, 7
    %v1081 = vsub.s32 %v1078, %v1080
    %v1082 = vrot.slane %v1066, %v1081
    %v1084 = vunpack.c.l.s4 1966171168
    %v1085 = vunpack.c.0.s8 %v1084
    %v1086 = vlaneseq
    %v1087 = vshrl.u32 %v1086, 7
    %v1088 = vsub.s32 %v1085, %v1087
    %v1089 = vrot.slane %v1067, %v1088
    %v1091 = vunpack.c.l.s4 1966171168
    %v1092 = vunpack.c.0.s8 %v1091
    %v1093 = vlaneseq
    %v1094 = vshrl.u32 %v1093, 7
    %v1095 = vsub.s32 %v1092, %v1094
    %v1096 = vrot.slane %v1068, %v1095
    %v1097 = vcombine.high %v1075, %v1075
    %v1098 = vcombine.high %v1082, %v1082
    %v1099 = vcombine.high %v1089, %v1089
    %v1100 = vcombine.high %v1096, %v1096
    %v1101 = vcombine.high %v541, %v541
    %v1103 = vunpack.c.l.s4 1966171168
    %v1104 = vunpack.c.0.s8 %v1103
    %v1105 = vlaneseq
    %v1106 = vshrl.u32 %v1105, 7
    %v1107 = vsub.s32 %v1104, %v1106
    %v1108 = vrot.slane %v541, %v1107
    %v1110 = vunpack.c.l.s4 1966171168
    %v1111 = vunpack.c.0.s8 %v1110
    %v1112 = vlaneseq
    %v1113 = vshrl.u32 %v1112, 7
    %v1114 = vsub.s32 %v1111, %v1113
    %v1115 = vrot.slane %v1101, %v1114
    %v1116 = vcombine.high %v1108, %v1108
    %v1117 = vcombine.high %v1115, %v1115
    %v1119 = vunpack.c.l.s4 1966171168
    %v1120 = vunpack.c.0.s8 %v1119
    %v1121 = vlaneseq
    %v1122 = vshrl.u32 %v1121, 7
    %v1123 = vsub.s32 %v1120, %v1122
    %v1124 = vrot.slane %v1108, %v1123
    %v1126 = vunpack.c.l.s4 1966171168
    %v1127 = vunpack.c.0.s8 %v1126
    %v1128 = vlaneseq
    %v1129 = vshrl.u32 %v1128, 7
    %v1130 = vsub.s32 %v1127, %v1129
    %v1131 = vrot.slane %v1115, %v1130
    %v1133 = vunpack.c.l.s4 1966171168
    %v1134 = vunpack.c.0.s8 %v1133
    %v1135 = vlaneseq
    %v1136 = vshrl.u32 %v1135, 7
    %v1137 = vsub.s32 %v1134, %v1136
    %v1138 = vrot.slane %v1116, %v1137
    %v1140 = vunpack.c.l.s4 1966171168
    %v1141 = vunpack.c.0.s8 %v1140
    %v1142 = vlaneseq
    %v1143 = vshrl.u32 %v1142, 7
    %v1144 = vsub.s32 %v1141, %v1143
    %v1145 = vrot.slane %v1117, %v1144
    %v1146 = vcombine.high %v1124, %v1124
    %v1147 = vcombine.high %v1131, %v1131
    %v1148 = vcombine.high %v1138, %v1138
    %v1149 = vcombine.high %v1145, %v1145
    %v1150 = vcombine.high %v542, %v542
    %v1152 = vunpack.c.l.s4 1966171168
    %v1153 = vunpack.c.0.s8 %v1152
    %v1154 = vlaneseq
    %v1155 = vshrl.u32 %v1154, 7
    %v1156 = vsub.s32 %v1153, %v1155
    %v1157 = vrot.slane %v542, %v1156
    %v1159 = vunpack.c.l.s4 1966171168
    %v1160 = vunpack.c.0.s8 %v1159
    %v1161 = vlaneseq
    %v1162 = vshrl.u32 %v1161, 7
    %v1163 = vsub.s32 %v1160, %v1162
    %v1164 = vrot.slane %v1150, %v1163
    %v1165 = vcombine.high %v1157, %v1157
    %v1166 = vcombine.high %v1164, %v1164
    %v1168 = vunpack.c.l.s4 1966171168
    %v1169 = vunpack.c.0.s8 %v1168
    %v1170 = vlaneseq
    %v1171 = vshrl.u32 %v1170, 7
    %v1172 = vsub.s32 %v1169, %v1171
    %v1173 = vrot.slane %v1157, %v1172
    %v1175 = vunpack.c.l.s4 1966171168
    %v1176 = vunpack.c.0.s8 %v1175
    %v1177 = vlaneseq
    %v1178 = vshrl.u32 %v1177, 7
    %v1179 = vsub.s32 %v1176, %v1178
    %v1180 = vrot.slane %v1164, %v1179
    %v1182 = vunpack.c.l.s4 1966171168
    %v1183 = vunpack.c.0.s8 %v1182
    %v1184 = vlaneseq
    %v1185 = vshrl.u32 %v1184, 7
    %v1186 = vsub.s32 %v1183, %v1185
    %v1187 = vrot.slane %v1165, %v1186
    %v1189 = vunpack.c.l.s4 1966171168
    %v1190 = vunpack.c.0.s8 %v1189
    %v1191 = vlaneseq
    %v1192 = vshrl.u32 %v1191, 7
    %v1193 = vsub.s32 %v1190, %v1192
    %v1194 = vrot.slane %v1166, %v1193
    %v1195 = vcombine.high %v1173, %v1173
    %v1196 = vcombine.high %v1180, %v1180
    %v1197 = vcombine.high %v1187, %v1187
    %v1198 = vcombine.high %v1194, %v1194
    %v1199 = vcombine.high %v543, %v543
    %v1201 = vunpack.c.l.s4 1966171168
    %v1202 = vunpack.c.0.s8 %v1201
    %v1203 = vlaneseq
    %v1204 = vshrl.u32 %v1203, 7
    %v1205 = vsub.s32 %v1202, %v1204
    %v1206 = vrot.slane %v543, %v1205
    %v1208 = vunpack.c.l.s4 1966171168
    %v1209 = vunpack.c.0.s8 %v1208
    %v1210 = vlaneseq
    %v1211 = vshrl.u32 %v1210, 7
    %v1212 = vsub.s32 %v1209, %v1211
    %v1213 = vrot.slane %v1199, %v1212
    %v1214 = vcombine.high %v1206, %v1206
    %v1215 = vcombine.high %v1213, %v1213
    %v1217 = vunpack.c.l.s4 1966171168
    %v1218 = vunpack.c.0.s8 %v1217
    %v1219 = vlaneseq
    %v1220 = vshrl.u32 %v1219, 7
    %v1221 = vsub.s32 %v1218, %v1220
    %v1222 = vrot.slane %v1206, %v1221
    %v1224 = vunpack.c.l.s4 1966171168
    %v1225 = vunpack.c.0.s8 %v1224
    %v1226 = vlaneseq
    %v1227 = vshrl.u32 %v1226, 7
    %v1228 = vsub.s32 %v1225, %v1227
    %v1229 = vrot.slane %v1213, %v1228
    %v1231 = vunpack.c.l.s4 1966171168
    %v1232 = vunpack.c.0.s8 %v1231
    %v1233 = vlaneseq
    %v1234 = vshrl.u32 %v1233, 7
    %v1235 = vsub.s32 %v1232, %v1234
    %v1236 = vrot.slane %v1214, %v1235
    %v1238 = vunpack.c.l.s4 1966171168
    %v1239 = vunpack.c.0.s8 %v1238
    %v1240 = vlaneseq
    %v1241 = vshrl.u32 %v1240, 7
    %v1242 = vsub.s32 %v1239, %v1241
    %v1243 = vrot.slane %v1215, %v1242
    %v1244 = vcombine.high %v1222, %v1222
    %v1245 = vcombine.high %v1229, %v1229
    %v1246 = vcombine.high %v1236, %v1236
    %v1247 = vcombine.high %v1243, %v1243
    %v1248 = vcombine.high %v544, %v544
    %v1250 = vunpack.c.l.s4 1966171168
    %v1251 = vunpack.c.0.s8 %v1250
    %v1252 = vlaneseq
    %v1253 = vshrl.u32 %v1252, 7
    %v1254 = vsub.s32 %v1251, %v1253
    %v1255 = vrot.slane %v544, %v1254
    %v1257 = vunpack.c.l.s4 1966171168
    %v1258 = vunpack.c.0.s8 %v1257
    %v1259 = vlaneseq
    %v1260 = vshrl.u32 %v1259, 7
    %v1261 = vsub.s32 %v1258, %v1260
    %v1262 = vrot.slane %v1248, %v1261
    %v1263 = vcombine.high %v1255, %v1255
    %v1264 = vcombine.high %v1262, %v1262
    %v1266 = vunpack.c.l.s4 1966171168
    %v1267 = vunpack.c.0.s8 %v1266
    %v1268 = vlaneseq
    %v1269 = vshrl.u32 %v1268, 7
    %v1270 = vsub.s32 %v1267, %v1269
    %v1271 = vrot.slane %v1255, %v1270
    %v1273 = vunpack.c.l.s4 1966171168
    %v1274 = vunpack.c.0.s8 %v1273
    %v1275 = vlaneseq
    %v1276 = vshrl.u32 %v1275, 7
    %v1277 = vsub.s32 %v1274, %v1276
    %v1278 = vrot.slane %v1262, %v1277
    %v1280 = vunpack.c.l.s4 1966171168
    %v1281 = vunpack.c.0.s8 %v1280
    %v1282 = vlaneseq
    %v1283 = vshrl.u32 %v1282, 7
    %v1284 = vsub.s32 %v1281, %v1283
    %v1285 = vrot.slane %v1263, %v1284
    %v1287 = vunpack.c.l.s4 1966171168
    %v1288 = vunpack.c.0.s8 %v1287
    %v1289 = vlaneseq
    %v1290 = vshrl.u32 %v1289, 7
    %v1291 = vsub.s32 %v1288, %v1290
    %v1292 = vrot.slane %v1264, %v1291
    %v1293 = vcombine.high %v1271, %v1271
    %v1294 = vcombine.high %v1278, %v1278
    %v1295 = vcombine.high %v1285, %v1285
    %v1296 = vcombine.high %v1292, %v1292
    %v1297 = vcombine.high %v545, %v545
    %v1299 = vunpack.c.l.s4 1966171168
    %v1300 = vunpack.c.0.s8 %v1299
    %v1301 = vlaneseq
    %v1302 = vshrl.u32 %v1301, 7
    %v1303 = vsub.s32 %v1300, %v1302
    %v1304 = vrot.slane %v545, %v1303
    %v1306 = vunpack.c.l.s4 1966171168
    %v1307 = vunpack.c.0.s8 %v1306
    %v1308 = vlaneseq
    %v1309 = vshrl.u32 %v1308, 7
    %v1310 = vsub.s32 %v1307, %v1309
    %v1311 = vrot.slane %v1297, %v1310
    %v1312 = vcombine.high %v1304, %v1304
    %v1313 = vcombine.high %v1311, %v1311
    %v1315 = vunpack.c.l.s4 1966171168
    %v1316 = vunpack.c.0.s8 %v1315
    %v1317 = vlaneseq
    %v1318 = vshrl.u32 %v1317, 7
    %v1319 = vsub.s32 %v1316, %v1318
    %v1320 = vrot.slane %v1304, %v1319
    %v1322 = vunpack.c.l.s4 1966171168
    %v1323 = vunpack.c.0.s8 %v1322
    %v1324 = vlaneseq
    %v1325 = vshrl.u32 %v1324, 7
    %v1326 = vsub.s32 %v1323, %v1325
    %v1327 = vrot.slane %v1311, %v1326
    %v1329 = vunpack.c.l.s4 1966171168
    %v1330 = vunpack.c.0.s8 %v1329
    %v1331 = vlaneseq
    %v1332 = vshrl.u32 %v1331, 7
    %v1333 = vsub.s32 %v1330, %v1332
    %v1334 = vrot.slane %v1312, %v1333
    %v1336 = vunpack.c.l.s4 1966171168
    %v1337 = vunpack.c.0.s8 %v1336
    %v1338 = vlaneseq
    %v1339 = vshrl.u32 %v1338, 7
    %v1340 = vsub.s32 %v1337, %v1339
    %v1341 = vrot.slane %v1313, %v1340
    %v1342 = vcombine.high %v1320, %v1320
    %v1343 = vcombine.high %v1327, %v1327
    %v1344 = vcombine.high %v1334, %v1334
    %v1345 = vcombine.high %v1341, %v1341
    %vm1474 = vcmask 1040384
    %v1475 = vsel %vm1474, %v585, 0.0
    %v1476 = vsel %vm1474, %v634, 0.0
    %v1477 = vadd.f32 %v1475, %v1476
    %v1478 = vsel %vm1474, %v683, 0.0
    %v1479 = vadd.f32 %v1477, %v1478
    %v1480 = vsel %vm1474, %v732, 0.0
    %v1481 = vadd.f32 %v1479, %v1480
    %v1482 = vsel %vm1474, %v781, 0.0
    %v1483 = vadd.f32 %v1481, %v1482
    %v1484 = vsel %vm1474, %v830, 0.0
    %v1485 = vadd.f32 %v1483, %v1484
    %v1486 = vsel %vm1474, %v879, 0.0
    %v1487 = vadd.f32 %v1485, %v1486
    %v1488 = vsel %vm1474, %v928, 0.0
    %v1489 = vadd.f32 %v1487, %v1488
    %v1490 = vsel %vm1474, %v977, 0.0
    %v1491 = vadd.f32 %v1489, %v1490
    %v1492 = vsel %vm1474, %v1026, 0.0
    %v1493 = vadd.f32 %v1491, %v1492
    %v1494 = vsel %vm1474, %v1075, 0.0
    %v1495 = vadd.f32 %v1493, %v1494
    %v1496 = vsel %vm1474, %v1124, 0.0
    %v1497 = vadd.f32 %v1495, %v1496
    %v1498 = vsel %vm1474, %v1173, 0.0
    %v1499 = vadd.f32 %v1497, %v1498
    %v1500 = vsel %vm1474, %v1222, 0.0
    %v1501 = vadd.f32 %v1499, %v1500
    %v1502 = vsel %vm1474, %v1271, 0.0
    %v1503 = vadd.f32 %v1501, %v1502
    %v1504 = vsel %vm1474, %v1320, 0.0
    %v1505 = vadd.f32 %v1503, %v1504
    %v1506 = vsel %vm1474, %v599, 0.0
    %v1507 = vsel %vm1474, %v648, 0.0
    %v1508 = vadd.f32 %v1506, %v1507
    %v1509 = vsel %vm1474, %v697, 0.0
    %v1510 = vadd.f32 %v1508, %v1509
    %v1511 = vsel %vm1474, %v746, 0.0
    %v1512 = vadd.f32 %v1510, %v1511
    %v1513 = vsel %vm1474, %v795, 0.0
    %v1514 = vadd.f32 %v1512, %v1513
    %v1515 = vsel %vm1474, %v844, 0.0
    %v1516 = vadd.f32 %v1514, %v1515
    %v1517 = vsel %vm1474, %v893, 0.0
    %v1518 = vadd.f32 %v1516, %v1517
    %v1519 = vsel %vm1474, %v942, 0.0
    %v1520 = vadd.f32 %v1518, %v1519
    %v1521 = vsel %vm1474, %v991, 0.0
    %v1522 = vadd.f32 %v1520, %v1521
    %v1523 = vsel %vm1474, %v1040, 0.0
    %v1524 = vadd.f32 %v1522, %v1523
    %v1525 = vsel %vm1474, %v1089, 0.0
    %v1526 = vadd.f32 %v1524, %v1525
    %v1527 = vsel %vm1474, %v1138, 0.0
    %v1528 = vadd.f32 %v1526, %v1527
    %v1529 = vsel %vm1474, %v1187, 0.0
    %v1530 = vadd.f32 %v1528, %v1529
    %v1531 = vsel %vm1474, %v1236, 0.0
    %v1532 = vadd.f32 %v1530, %v1531
    %v1533 = vsel %vm1474, %v1285, 0.0
    %v1534 = vadd.f32 %v1532, %v1533
    %v1535 = vsel %vm1474, %v1334, 0.0
    %v1536 = vadd.f32 %v1534, %v1535
    %v1537 = vsel %vm1474, %v607, 0.0
    %v1538 = vsel %vm1474, %v656, 0.0
    %v1539 = vadd.f32 %v1537, %v1538
    %v1540 = vsel %vm1474, %v705, 0.0
    %v1541 = vadd.f32 %v1539, %v1540
    %v1542 = vsel %vm1474, %v754, 0.0
    %v1543 = vadd.f32 %v1541, %v1542
    %v1544 = vsel %vm1474, %v803, 0.0
    %v1545 = vadd.f32 %v1543, %v1544
    %v1546 = vsel %vm1474, %v852, 0.0
    %v1547 = vadd.f32 %v1545, %v1546
    %v1548 = vsel %vm1474, %v901, 0.0
    %v1549 = vadd.f32 %v1547, %v1548
    %v1550 = vsel %vm1474, %v950, 0.0
    %v1551 = vadd.f32 %v1549, %v1550
    %v1552 = vsel %vm1474, %v999, 0.0
    %v1553 = vadd.f32 %v1551, %v1552
    %v1554 = vsel %vm1474, %v1048, 0.0
    %v1555 = vadd.f32 %v1553, %v1554
    %v1556 = vsel %vm1474, %v1097, 0.0
    %v1557 = vadd.f32 %v1555, %v1556
    %v1558 = vsel %vm1474, %v1146, 0.0
    %v1559 = vadd.f32 %v1557, %v1558
    %v1560 = vsel %vm1474, %v1195, 0.0
    %v1561 = vadd.f32 %v1559, %v1560
    %v1562 = vsel %vm1474, %v1244, 0.0
    %v1563 = vadd.f32 %v1561, %v1562
    %v1564 = vsel %vm1474, %v1293, 0.0
    %v1565 = vadd.f32 %v1563, %v1564
    %v1566 = vsel %vm1474, %v1342, 0.0
    %v1567 = vadd.f32 %v1565, %v1566
    %v1568 = vsel %vm1474, %v609, 0.0
    %v1569 = vsel %vm1474, %v658, 0.0
    %v1570 = vadd.f32 %v1568, %v1569
    %v1571 = vsel %vm1474, %v707, 0.0
    %v1572 = vadd.f32 %v1570, %v1571
    %v1573 = vsel %vm1474, %v756, 0.0
    %v1574 = vadd.f32 %v1572, %v1573
    %v1575 = vsel %vm1474, %v805, 0.0
    %v1576 = vadd.f32 %v1574, %v1575
    %v1577 = vsel %vm1474, %v854, 0.0
    %v1578 = vadd.f32 %v1576, %v1577
    %v1579 = vsel %vm1474, %v903, 0.0
    %v1580 = vadd.f32 %v1578, %v1579
    %v1581 = vsel %vm1474, %v952, 0.0
    %v1582 = vadd.f32 %v1580, %v1581
    %v1583 = vsel %vm1474, %v1001, 0.0
    %v1584 = vadd.f32 %v1582, %v1583
    %v1585 = vsel %vm1474, %v1050, 0.0
    %v1586 = vadd.f32 %v1584, %v1585
    %v1587 = vsel %vm1474, %v1099, 0.0
    %v1588 = vadd.f32 %v1586, %v1587
    %v1589 = vsel %vm1474, %v1148, 0.0
    %v1590 = vadd.f32 %v1588, %v1589
    %v1591 = vsel %vm1474, %v1197, 0.0
    %v1592 = vadd.f32 %v1590, %v1591
    %v1593 = vsel %vm1474, %v1246, 0.0
    %v1594 = vadd.f32 %v1592, %v1593
    %v1595 = vsel %vm1474, %v1295, 0.0
    %v1596 = vadd.f32 %v1594, %v1595
    %v1597 = vsel %vm1474, %v1344, 0.0
    %v1598 = vadd.f32 %v1596, %v1597
    %v1599 = vsel %vm1474, %v592, 0.0
    %v1600 = vsel %vm1474, %v641, 0.0
    %v1601 = vadd.f32 %v1599, %v1600
    %v1602 = vsel %vm1474, %v690, 0.0
    %v1603 = vadd.f32 %v1601, %v1602
    %v1604 = vsel %vm1474, %v739, 0.0
    %v1605 = vadd.f32 %v1603, %v1604
    %v1606 = vsel %vm1474, %v788, 0.0
    %v1607 = vadd.f32 %v1605, %v1606
    %v1608 = vsel %vm1474, %v837, 0.0
    %v1609 = vadd.f32 %v1607, %v1608
    %v1610 = vsel %vm1474, %v886, 0.0
    %v1611 = vadd.f32 %v1609, %v1610
    %v1612 = vsel %vm1474, %v935, 0.0
    %v1613 = vadd.f32 %v1611, %v1612
    %v1614 = vsel %vm1474, %v984, 0.0
    %v1615 = vadd.f32 %v1613, %v1614
    %v1616 = vsel %vm1474, %v1033, 0.0
    %v1617 = vadd.f32 %v1615, %v1616
    %v1618 = vsel %vm1474, %v1082, 0.0
    %v1619 = vadd.f32 %v1617, %v1618
    %v1620 = vsel %vm1474, %v1131, 0.0
    %v1621 = vadd.f32 %v1619, %v1620
    %v1622 = vsel %vm1474, %v1180, 0.0
    %v1623 = vadd.f32 %v1621, %v1622
    %v1624 = vsel %vm1474, %v1229, 0.0
    %v1625 = vadd.f32 %v1623, %v1624
    %v1626 = vsel %vm1474, %v1278, 0.0
    %v1627 = vadd.f32 %v1625, %v1626
    %v1628 = vsel %vm1474, %v1327, 0.0
    %v1629 = vadd.f32 %v1627, %v1628
    %v1630 = vsel %vm1474, %v606, 0.0
    %v1631 = vsel %vm1474, %v655, 0.0
    %v1632 = vadd.f32 %v1630, %v1631
    %v1633 = vsel %vm1474, %v704, 0.0
    %v1634 = vadd.f32 %v1632, %v1633
    %v1635 = vsel %vm1474, %v753, 0.0
    %v1636 = vadd.f32 %v1634, %v1635
    %v1637 = vsel %vm1474, %v802, 0.0
    %v1638 = vadd.f32 %v1636, %v1637
    %v1639 = vsel %vm1474, %v851, 0.0
    %v1640 = vadd.f32 %v1638, %v1639
    %v1641 = vsel %vm1474, %v900, 0.0
    %v1642 = vadd.f32 %v1640, %v1641
    %v1643 = vsel %vm1474, %v949, 0.0
    %v1644 = vadd.f32 %v1642, %v1643
    %v1645 = vsel %vm1474, %v998, 0.0
    %v1646 = vadd.f32 %v1644, %v1645
    %v1647 = vsel %vm1474, %v1047, 0.0
    %v1648 = vadd.f32 %v1646, %v1647
    %v1649 = vsel %vm1474, %v1096, 0.0
    %v1650 = vadd.f32 %v1648, %v1649
    %v1651 = vsel %vm1474, %v1145, 0.0
    %v1652 = vadd.f32 %v1650, %v1651
    %v1653 = vsel %vm1474, %v1194, 0.0
    %v1654 = vadd.f32 %v1652, %v1653
    %v1655 = vsel %vm1474, %v1243, 0.0
    %v1656 = vadd.f32 %v1654, %v1655
    %v1657 = vsel %vm1474, %v1292, 0.0
    %v1658 = vadd.f32 %v1656, %v1657
    %v1659 = vsel %vm1474, %v1341, 0.0
    %v1660 = vadd.f32 %v1658, %v1659
    %v1661 = vsel %vm1474, %v608, 0.0
    %v1662 = vsel %vm1474, %v657, 0.0
    %v1663 = vadd.f32 %v1661, %v1662
    %v1664 = vsel %vm1474, %v706, 0.0
    %v1665 = vadd.f32 %v1663, %v1664
    %v1666 = vsel %vm1474, %v755, 0.0
    %v1667 = vadd.f32 %v1665, %v1666
    %v1668 = vsel %vm1474, %v804, 0.0
    %v1669 = vadd.f32 %v1667, %v1668
    %v1670 = vsel %vm1474, %v853, 0.0
    %v1671 = vadd.f32 %v1669, %v1670
    %v1672 = vsel %vm1474, %v902, 0.0
    %v1673 = vadd.f32 %v1671, %v1672
    %v1674 = vsel %vm1474, %v951, 0.0
    %v1675 = vadd.f32 %v1673, %v1674
    %v1676 = vsel %vm1474, %v1000, 0.0
    %v1677 = vadd.f32 %v1675, %v1676
    %v1678 = vsel %vm1474, %v1049, 0.0
    %v1679 = vadd.f32 %v1677, %v1678
    %v1680 = vsel %vm1474, %v1098, 0.0
    %v1681 = vadd.f32 %v1679, %v1680
    %v1682 = vsel %vm1474, %v1147, 0.0
    %v1683 = vadd.f32 %v1681, %v1682
    %v1684 = vsel %vm1474, %v1196, 0.0
    %v1685 = vadd.f32 %v1683, %v1684
    %v1686 = vsel %vm1474, %v1245, 0.0
    %v1687 = vadd.f32 %v1685, %v1686
    %v1688 = vsel %vm1474, %v1294, 0.0
    %v1689 = vadd.f32 %v1687, %v1688
    %v1690 = vsel %vm1474, %v1343, 0.0
    %v1691 = vadd.f32 %v1689, %v1690
    %v1692 = vsel %vm1474, %v610, 0.0
    %v1693 = vsel %vm1474, %v659, 0.0
    %v1694 = vadd.f32 %v1692, %v1693
    %v1695 = vsel %vm1474, %v708, 0.0
    %v1696 = vadd.f32 %v1694, %v1695
    %v1697 = vsel %vm1474, %v757, 0.0
    %v1698 = vadd.f32 %v1696, %v1697
    %v1699 = vsel %vm1474, %v806, 0.0
    %v1700 = vadd.f32 %v1698, %v1699
    %v1701 = vsel %vm1474, %v855, 0.0
    %v1702 = vadd.f32 %v1700, %v1701
    %v1703 = vsel %vm1474, %v904, 0.0
    %v1704 = vadd.f32 %v1702, %v1703
    %v1705 = vsel %vm1474, %v953, 0.0
    %v1706 = vadd.f32 %v1704, %v1705
    %v1707 = vsel %vm1474, %v1002, 0.0
    %v1708 = vadd.f32 %v1706, %v1707
    %v1709 = vsel %vm1474, %v1051, 0.0
    %v1710 = vadd.f32 %v1708, %v1709
    %v1711 = vsel %vm1474, %v1100, 0.0
    %v1712 = vadd.f32 %v1710, %v1711
    %v1713 = vsel %vm1474, %v1149, 0.0
    %v1714 = vadd.f32 %v1712, %v1713
    %v1715 = vsel %vm1474, %v1198, 0.0
    %v1716 = vadd.f32 %v1714, %v1715
    %v1717 = vsel %vm1474, %v1247, 0.0
    %v1718 = vadd.f32 %v1716, %v1717
    %v1719 = vsel %vm1474, %v1296, 0.0
    %v1720 = vadd.f32 %v1718, %v1719
    %v1721 = vsel %vm1474, %v1345, 0.0
    %v1722 = vadd.f32 %v1720, %v1721
    %v1723 = vadd.f32 %v1505, 0.0
    %v1724 = vadd.f32 %v1536, 0.0
    %v1725 = vadd.f32 %v1567, 0.0
    %v1726 = vadd.f32 %v1598, 0.0
    %v1727 = vadd.f32 %v1629, 0.0
    %v1728 = vadd.f32 %v1660, 0.0
    %v1729 = vadd.f32 %v1691, 0.0
    %v1730 = vadd.f32 %v1722, 0.0
    %v1731 = vadd.f32 %v1723, 0.0
    %v1732 = vadd.f32 %v1724, 0.0
    %v1733 = vadd.f32 %v1725, 0.0
    %v1734 = vadd.f32 %v1726, 0.0
    %v1735 = vadd.f32 %v1727, 0.0
    %v1736 = vadd.f32 %v1728, 0.0
    %v1737 = vadd.f32 %v1729, 0.0
    %v1738 = vadd.f32 %v1730, 0.0
    %s1739 = sld [smem:[#allocation3]]
    %s1740 = sld [smem:[#allocation4]]
    %p1741 = scmp.eq.s32.totalorder %s1739, %s1740
    %s1742 = scalar_select %p1741, 1.0, 2.0
    %v1743 = vld [vmem:[#allocation5] sm:$0xff]
    %v1744 = vstv %s1742
    %v1745 = vmul.f32 %v1744, %v1731
    %v1746 = vmul.f32 %v1744, %v1732
    %v1747 = vmul.f32 %v1744, %v1733
    %v1748 = vmul.f32 %v1744, %v1734
    %v1749 = vmul.f32 %v1744, %v1735
    %v1750 = vmul.f32 %v1744, %v1736
    %v1751 = vmul.f32 %v1744, %v1737
    %v1752 = vmul.f32 %v1744, %v1738
    %v1761 = vrot.slane %v1746, 7
    %vm1762 = vcmask 1041409
    %v1763 = vsel %vm1762, %v1761, %v1745
    %v1764 = vrot.slane %v1747, 6
    %vm1765 = vcmask 1042434
    %v1766 = vsel %vm1765, %v1764, %v1763
    %v1767 = vrot.slane %v1748, 5
    %vm1768 = vcmask 1043459
    %v1769 = vsel %vm1768, %v1767, %v1766
    %v1770 = vrot.slane %v1749, 4
    %vm1771 = vcmask 1044484
    %v1772 = vsel %vm1771, %v1770, %v1769
    %v1773 = vrot.slane %v1750, 3
    %vm1774 = vcmask 1045509
    %v1775 = vsel %vm1774, %v1773, %v1772
    %v1776 = vrot.slane %v1751, 2
    %vm1777 = vcmask 1046534
    %v1778 = vsel %vm1777, %v1776, %v1775
    %v1779 = vrot.slane %v1752, 1
    %vm1780 = vcmask 1047559
    %v1781 = vsel %vm1780, %v1779, %v1778
    %v1783 = vadd.f32 %v1743, %v1781
    %1784 = vst [vmem:[#allocation5] sm:$0xff] %v1783
    // Predicated region
    $region22: #{tpu_custom_call.1} parent=1 // pred_check
      _
    $region23: #{tpu_custom_call.1} parent=1 // pred_check_branch
      %1786 = sbr.rel (0) target = $region25
    $region24: #{tpu_custom_call.1} parent=1 // pred_region
      %s1788 = ssub.s32 128, 128
      %1789 = vsyncadd [#allocation6], %s1788
      %s1791 = sshll.u32 [#allocation5], 4
      %s1792 = int_to_ptr.vmem [resolvable:$true] %s1791
      %1794 = dma.vmem_to_hbm [thread:$0]  %s1792, 128, %s6, [#allocation6]
    $region25: #{tpu_custom_call.1} parent=1 // pred_fallthru
      _
    // Predicated region
    $region26: #{tpu_custom_call.1} parent=1 // pred_check
      _
    $region27: #{tpu_custom_call.1} parent=1 // pred_check_branch
      %1796 = sbr.rel (0) target = $region29
    $region28: #{tpu_custom_call.1} parent=1 // pred_region
      %1797 = dma.done [#allocation6], 128
    $region29: #{tpu_custom_call.1} parent=1 // pred_fallthru
      _
    %1798 = vsyncpa [#allocation6], 1

</llo_original>
